<compile_context>
chip_gen: v7x
topology: tpu7x:2x2x1
jax: 0.10.0
libtpu: 0.0.40
codegen_flags: <defaults>
</compile_context>

<pallas_src>
import functools

import jax
import jax.numpy as jnp
from jax import lax
from jax.experimental import pallas as pl
from jax.experimental.pallas import tpu as pltpu


def _moco_logits_kernel(q_ref, lpos_ref, mem_ref, out_ref):
    """Grid step i:
         i == 0 : leading pad block -> zeros except l_pos in its last lane.
         i >= 1 : out block i = q_scaled @ mem_tile(i-1).T  (lane-dense (B, TK) slab).
    """
    i = pl.program_id(0)

    @pl.when(i == 0)
    def _():
        lane = lax.broadcasted_iota(jnp.int32, out_ref.shape, 1)
        out_ref[...] = jnp.where(
            lane == out_ref.shape[-1] - 1,
            lpos_ref[...].astype(jnp.float32),
            0.0,
        ).astype(out_ref.dtype)

    @pl.when(i > 0)
    def _():
        out_ref[...] = lax.dot_general(
            q_ref[...], mem_ref[...],
            dimension_numbers=(((1,), (1,)), ((), ())),   # contract last dims, no .T
            preferred_element_type=jnp.float32,
        ).astype(out_ref.dtype)


def _vmem_budget_bytes():
    """~55% of per-core VMEM (generation aware: 64 MiB on v7x, 128 MiB on v5e/v6e)."""
    cap = 64 * 1024 * 1024  # conservative default (v7x per-TC size)
    try:
        info = pltpu.get_tpu_info()
        cap = int(getattr(info, "vmem_capacity_bytes", cap))
    except Exception:
        pass
    return int(cap * 0.55)


def _pick_queue_tile(K, D, B, mem_isz, out_isz, q_isz, max_tile, vmem_budget):
    """Largest multiple-of-128 tile <= max_tile whose double-buffered footprint fits
    the VMEM budget. Prefers a tile that divides K; otherwise a ragged last tile is
    handled with a cdiv grid (never a whole-K single tile)."""
    def footprint(tk):
        return 2 * (B * D * q_isz + B * 128 * 4
                    + tk * D * mem_isz + B * tk * out_isz)

    tk = min(max(128, (int(max_tile) // 128) * 128), K)
    tk = max(128, (tk // 128) * 128)
    while tk > 128 and footprint(tk) > vmem_budget:
        tk -= 128
    # Prefer an even divisor of K (no ragged last tile), but never shrink below half.
    tk_div = tk
    while tk_div > 128 and K % tk_div != 0:
        tk_div -= 128
    if K % tk_div == 0 and 2 * tk_div >= tk:
        tk = tk_div
    return tk


def memory_moco_forward(q, k, memory, index, z, *, T=0.07, use_softmax=True,
                        output_size=None, max_tile=8192, out_dtype=jnp.float32):
    """Returns (out, new_memory, new_index, new_z) matching MemoryMoCo.forward.

    `memory` should be donated under jit (in-place queue update) and is ideally kept
    in bfloat16 by the caller (halves queue-read HBM traffic; f32 accumulation is
    preserved inside the kernel).
    """
    B, D = q.shape
    K, Dm = memory.shape
    assert D == Dm
    index = jnp.asarray(index, dtype=jnp.int32)
    z = jnp.asarray(z, dtype=jnp.float32)

    inv_scale = (1.0 / float(T)) if use_softmax else 1.0

    q_f32 = q.astype(jnp.float32)
    k_f32 = k.astype(jnp.float32)

    # Positive logits: tiny (B*D flops) -> plain JAX f32, overlapped with the kernel.
    l_pos = jnp.sum(q_f32 * k_f32, axis=1, keepdims=True) * inv_scale      # (B, 1)

    # Fold 1/T into q once (O(B*D)); match the queue dtype for the MXU operands.
    q_scaled = (q_f32 * inv_scale).astype(memory.dtype)

    mem_isz = jnp.dtype(memory.dtype).itemsize
    out_isz = jnp.dtype(out_dtype).itemsize
    q_isz = jnp.dtype(q_scaled.dtype).itemsize

    if K % 128 != 0:
        # TODO(synk): non-lane-aligned queue sizes (rare for MoCo) fall back to XLA.
        l_neg = jnp.dot(q_scaled.astype(jnp.float32), memory.astype(jnp.float32).T)
        out = jnp.concatenate([l_pos, l_neg], axis=1).astype(out_dtype)
    else:
        budget = _vmem_budget_bytes()
        TK = _pick_queue_tile(K, D, B, mem_isz, out_isz, q_isz, max_tile, budget)
        num_k_tiles = -(-K // TK)                 # cdiv; ragged last tile is masked
        padded_w = TK * (num_k_tiles + 1)         # + one leading pad block for l_pos

        footprint = 2 * (B * D * q_isz + B * 128 * 4
                         + TK * D * mem_isz + B * TK * out_isz)
        vmem_limit = int(min(budget, max(4 * footprint, 16 * 1024 * 1024)))

        cost = pl.CostEstimate(
            flops=2 * B * K * D,
            bytes_accessed=(K * D * mem_isz + B * padded_w * out_isz
                            + B * D * q_isz + B * 4),
            transcendentals=0,
        )

        # NOTE: only v7x cares about megacore balance of the (num_k_tiles+1) steps;
        # with large TK the imbalance is at most one tile. Default Buffered(2) depth
        # is kept — raise only if a trace shows exposed DMA.
        out_full = pl.pallas_call(
            _moco_logits_kernel,
            out_shape=jax.ShapeDtypeStruct((B, padded_w), out_dtype),
            grid=(num_k_tiles + 1,),
            in_specs=[
                pl.BlockSpec((B, D), lambda i: (0, 0)),                       # q resident
                pl.BlockSpec((B, 1), lambda i: (0, 0)),                       # l_pos resident
                pl.BlockSpec((TK, D), lambda i: (jnp.maximum(i - 1, 0), 0)),  # queue streamed
            ],
            out_specs=pl.BlockSpec((B, TK), lambda i: (0, i)),
            compiler_params=pltpu.CompilerParams(
                dimension_semantics=("parallel",),
                vmem_limit_bytes=vmem_limit,
            ),
            cost_estimate=cost,
        )(q_scaled, l_pos, memory)

        # l_pos sits in lane TK-1 of the pad block; l_neg starts at lane TK, so
        # [l_pos | l_neg] is already contiguous — no jnp.concatenate HBM round-trip.
        out = out_full[:, TK - 1: TK + K]

    if use_softmax:
        new_z = z
    else:
        # This module's NCE branch: Z = mean(raw out) * outputSize on first call
        # (no exp, no /T in this variant), then frozen; threaded as an explicit carry.
        new_z = jnp.where(z < 0, jnp.mean(out.astype(jnp.float32)) * output_size, z)
        out = (out.astype(jnp.float32) / new_z).astype(out.dtype)

    # Queue update: memory[(index + arange(B)) % K] = k ; index = (index + B) % K.
    # Non-wrapping case uses dynamic_update_slice (reliably in-place on the donated
    # queue); wrap-around falls back to a modulo scatter.
    k_cast = k.astype(memory.dtype)
    zero = jnp.zeros((), dtype=index.dtype)
    new_memory = lax.cond(
        index + B <= K,
        lambda mem: lax.dynamic_update_slice(mem, k_cast, (index, zero)),
        lambda mem: mem.at[jnp.mod(index + jnp.arange(B, dtype=index.dtype), K)].set(k_cast),
        memory,
    )
    new_index = (index + B) % K
    return out, new_memory, new_index, new_z


if __name__ == "__main__":
    # Small deterministic example consistent with the module:
    # inputSize (feature dim) = 128, queueSize K = 8192, batch = 8.
    input_size = 128
    queue_size = 8192
    output_size = 4096      # "outputSize" (dataset size) — only used by the NCE/Z path
    batch = 8
    T = 0.07

    key = jax.random.PRNGKey(0)
    kq, kk, kmem = jax.random.split(key, 3)

    # memory init like torch.rand(K, D) * 2*stdv - stdv; keep the queue in bf16
    # (recommended production config — halves queue-read HBM traffic).
    stdv = 1.0 / (input_size / 3.0) ** 0.5
    memory = jax.random.uniform(kmem, (queue_size, input_size), dtype=jnp.float32,
                                minval=-stdv, maxval=stdv).astype(jnp.bfloat16)
    memory_nce = jnp.copy(memory)   # separate queue for the NCE-branch check (donation)

    q = jax.random.normal(kq, (batch, input_size), dtype=jnp.float32)
    k = jax.random.normal(kk, (batch, input_size), dtype=jnp.float32)
    q = q / jnp.linalg.norm(q, axis=1, keepdims=True)
    k = k / jnp.linalg.norm(k, axis=1, keepdims=True)

    # References in plain JAX — computed BEFORE the calls (the queue is donated).
    # Use the same bf16-rounded operands the kernel sees so the check isolates the
    # kernel from the (intentional) bf16 queue/q rounding.
    mem_f32 = memory.astype(jnp.float32)
    q_bf_scaled = (q / T).astype(jnp.bfloat16).astype(jnp.float32)
    q_bf_raw = q.astype(jnp.bfloat16).astype(jnp.float32)
    l_pos_ref = jnp.sum(q * k, axis=1, keepdims=True)
    out_ref = jnp.concatenate([l_pos_ref / T, q_bf_scaled @ mem_f32.T], axis=1)
    raw_ref = jnp.concatenate([l_pos_ref, q_bf_raw @ mem_f32.T], axis=1)
    z_ref = jnp.mean(raw_ref) * output_size
    out_ref, raw_ref, z_ref = jax.block_until_ready((out_ref, raw_ref, z_ref))

    # ---- softmax (hot) path -------------------------------------------------
    fwd = jax.jit(
        functools.partial(memory_moco_forward, T=T, use_softmax=True,
                          output_size=output_size, max_tile=2048),  # 4 K-tiles + pad block
        donate_argnums=(2,),   # donate the queue -> in-place row update
    )
    out, new_memory, new_index, _ = fwd(q, k, memory, jnp.int32(0), jnp.float32(-1.0))
    jax.block_until_ready((out, new_memory))

    assert out.shape == (batch, 1 + queue_size)
    assert jnp.allclose(out, out_ref, atol=2e-2, rtol=1e-2), \
        float(jnp.max(jnp.abs(out - out_ref)))
    # queue update check: rows 0..B-1 were overwritten with (bf16-cast) k
    assert jnp.allclose(new_memory[:batch].astype(jnp.float32),
                        k.astype(jnp.bfloat16).astype(jnp.float32))
    assert int(new_index) == batch % queue_size

    # ---- NCE path (lazy Z init; this module variant has no exp) -------------
    fwd_nce = jax.jit(
        functools.partial(memory_moco_forward, T=T, use_softmax=False,
                          output_size=output_size, max_tile=2048),
        donate_argnums=(2,),
    )
    out_nce, _, _, z_nce = fwd_nce(q, k, memory_nce, jnp.int32(0), jnp.float32(-1.0))
    jax.block_until_ready((out_nce, z_nce))
    assert jnp.allclose(z_nce, z_ref, rtol=5e-2, atol=2e-2)
    assert jnp.allclose(out_nce * z_nce, raw_ref, atol=2e-2, rtol=1e-2)

    print("KERNEL_OK")
</pallas_src>

<mosaic_0001>
module attributes {stable_mosaic.version = 11 : i64} {
  func.func @_moco_logits_kernel(%arg0: i32, %arg1: memref<8x128xbf16, #tpu.memory_space<vmem>>, %arg2: memref<8x1xf32, #tpu.memory_space<vmem>>, %arg3: memref<2048x128xbf16, #tpu.memory_space<vmem>>, %arg4: memref<8x2048xf32, #tpu.memory_space<vmem>>) attributes {dimension_semantics = [#tpu.dimension_semantics<parallel>], iteration_bounds = array<i64: 5>, scalar_prefetch = 0 : i64, scratch_operands = 0 : i64, tpu.core_type = #tpu.core_type<tc>, window_params = [{pipeline_mode = #tpu.pipeline_mode<synchronous>, transform_indices = @transform_0, window_bounds = array<i64: 8, 128>}, {pipeline_mode = #tpu.pipeline_mode<synchronous>, transform_indices = @transform_1, window_bounds = array<i64: 8, 1>}, {transform_indices = @transform_2, window_bounds = array<i64: 2048, 128>}, {transform_indices = @transform_3, window_bounds = array<i64: 8, 2048>}]} {
    %c0_i32 = arith.constant 0 : i32
    %0 = arith.cmpi eq, %arg0, %c0_i32 : i32
    %1 = arith.extui %0 : i1 to i32
    %c0_i32_0 = arith.constant 0 : i32
    %2 = arith.cmpi ne, %1, %c0_i32_0 : i32
    scf.if %2 {
      %6 = tpu.iota {dimensions = array<i32: 1>} : vector<8x2048xi32>
      %c2047_i32 = arith.constant 2047 : i32
      %7 = vector.broadcast %c2047_i32 : i32 to vector<8x2048xi32>
      %8 = arith.cmpi eq, %6, %7 : vector<8x2048xi32>
      %c0 = arith.constant 0 : index
      %c0_3 = arith.constant 0 : index
      %9 = vector.load %arg2[%c0, %c0_3] : memref<8x1xf32, #tpu.memory_space<vmem>>, vector<8x1xf32>
      %cst = arith.constant 0.000000e+00 : f32
      %10 = vector.shape_cast %9 : vector<8x1xf32> to vector<8x1xf32>
      %11 = vector.broadcast %10 : vector<8x1xf32> to vector<8x2048xf32>
      %12 = vector.broadcast %cst : f32 to vector<8x2048xf32>
      %13 = arith.select %8, %11, %12 : vector<8x2048xi1>, vector<8x2048xf32>
      %c0_4 = arith.constant 0 : index
      %c0_5 = arith.constant 0 : index
      %14 = vector.load %arg4[%c0_4, %c0_5] : memref<8x2048xf32, #tpu.memory_space<vmem>>, vector<8x2048xf32>
      tpu.vector_store %arg4[%c0_4, %c0_5], %13 {strides = array<i32>} : memref<8x2048xf32, #tpu.memory_space<vmem>>, vector<8x2048xf32>,
    } else {
    }
    %c0_i32_1 = arith.constant 0 : i32
    %3 = arith.cmpi sgt, %arg0, %c0_i32_1 : i32
    %4 = arith.extui %3 : i1 to i32
    %c0_i32_2 = arith.constant 0 : i32
    %5 = arith.cmpi ne, %4, %c0_i32_2 : i32
    scf.if %5 {
      %c0 = arith.constant 0 : index
      %c0_3 = arith.constant 0 : index
      %6 = vector.load %arg1[%c0, %c0_3] : memref<8x128xbf16, #tpu.memory_space<vmem>>, vector<8x128xbf16>
      %c0_4 = arith.constant 0 : index
      %c0_5 = arith.constant 0 : index
      %7 = vector.load %arg3[%c0_4, %c0_5] : memref<2048x128xbf16, #tpu.memory_space<vmem>>, vector<2048x128xbf16>
      %cst = arith.constant dense<0.000000e+00> : vector<8x2048xf32>
      %8 = tpu.matmul %6, %7, %cst {dimension_numbers = #tpu.dot_dimension_numbers<[1], [1], [0], [0], [0, 0, 1, 0], [], []>} : vector<8x128xbf16>, vector<2048x128xbf16>, vector<8x2048xf32> -> vector<8x2048xf32>
      %c0_6 = arith.constant 0 : index
      %c0_7 = arith.constant 0 : index
      %9 = vector.load %arg4[%c0_6, %c0_7] : memref<8x2048xf32, #tpu.memory_space<vmem>>, vector<8x2048xf32>
      tpu.vector_store %arg4[%c0_6, %c0_7], %8 {strides = array<i32>} : memref<8x2048xf32, #tpu.memory_space<vmem>>, vector<8x2048xf32>,
    } else {
    }
    return
  }
  func.func @transform_0(%arg0: i32) -> (i32, i32) {
    %c0_i32 = arith.constant 0 : i32
    %c0_i32_0 = arith.constant 0 : i32
    %c0_i32_1 = arith.constant 0 : i32
    return %c0_i32, %c0_i32_0 : i32, i32
  }
  func.func @transform_1(%arg0: i32) -> (i32, i32) {
    %c0_i32 = arith.constant 0 : i32
    %c0_i32_0 = arith.constant 0 : i32
    %c0_i32_1 = arith.constant 0 : i32
    return %c0_i32, %c0_i32_0 : i32, i32
  }
  func.func @transform_2(%arg0: i32) -> (i32, i32) {
    %c1_i32 = arith.constant 1 : i32
    %0 = arith.subi %arg0, %c1_i32 : i32
    %c0_i32 = arith.constant 0 : i32
    %1 = arith.maxsi %0, %c0_i32 : i32
    %c0_i32_0 = arith.constant 0 : i32
    %c0_i32_1 = arith.constant 0 : i32
    return %1, %c0_i32_0 : i32, i32
  }
  func.func @transform_3(%arg0: i32) -> (i32, i32) {
    %c0_i32 = arith.constant 0 : i32
    %c0_i32_0 = arith.constant 0 : i32
    return %c0_i32, %arg0 : i32, i32
  }
}

</mosaic_0001>

<llo_original>
// kernel: memory_moco_forward.1
$region0: #{memory_moco_forward.1}
  #allocation0 [shape = 'u32[]', space=smem, size = 0x4, offset = 0x4, fixed_abs, tag = 'smem constant byte address 0x4 - core index']
  #allocation1 [shape = 'u32[144,128]{1,0:T(1,128)}', space=vmem, size = 0x12000, scoped, tag = 'internal scratch']
  %s0 = inlined_call_operand.vmem [shape: bf16[8,128], index: 0, kind: input, shape index: {}]
  %s1 = inlined_call_operand.vmem [shape: f32[8,1], index: 1, kind: input, shape index: {}]
  %s2 = inlined_call_operand.hbm [shape: bf16[8192,128], index: 2, kind: input, shape index: {}]
  %s3 = inlined_call_operand.vmem [shape: f32[8,10240], index: 3, kind: output, shape index: {}]
  %s4 = sld [smem:[#allocation0]]
  $region57: #{memory_moco_forward.1} parent=0
    _
  %s6 = ssub.s32 1, %s4
  %s7 = scalar_select 0, %s6, %s4
  $region1: #{memory_moco_forward.1} parent=0
    #allocation2 [shape = 'u8[1048576]{0}', space=vmem, size = 0x100000, scoped, tag = 'input window, operand 2']
    #allocation3 [shape = 's32[2]{0}', space=sflag, size = 0x8, scoped, tag = 'scoped memory for memory_moco_forward.1']
    %8 = vsyncpa [#allocation3], 0
    %s9 = scalar_lea.sflag [#allocation3], 1
    %10 = vsyncpa %s9, 0
    loop: start=0, step=1, limit=7
    $region2: #{memory_moco_forward.1} parent=1 // loop_pre_header
      _
    $region3: #{memory_moco_forward.1} parent=1 // loop_header
      %s12 = sphi 0, %s16
      %p13 = scmp.ge.s32.totalorder %s12, 7
      %s20 = sphi 0, %s20
      %s22 = sphi 0, %s20
      %s23 = sphi 0, %s22
      %s37 = sphi 0, %s23
      %s41 = sphi 0, %s41
      %s43 = sphi 0, %s41
      %s44 = sphi 0, %s43
      %s58 = sphi 0, %s44
      %s70 = sphi 0, %s72
      %s73 = sphi 0, %s70
      %s74 = sphi 0, %s73
      %s90 = sphi 0, %s74
      %s96 = sphi 0, %s98
      %s99 = sphi 0, %s96
      %s100 = sphi 0, %s99
      %s116 = sphi 0, %s100
    $region4: #{memory_moco_forward.1} parent=1 // loop_header_branch
      %15 = sbr.rel (%p13) target = $region8
    $region5: #{memory_moco_forward.1} parent=1 // loop_body
      %s17 = ssub.s32 %s12, 1
      %s18 = ssub.s32 %s12, 2
      %s19 = sadd.s32 %s12, 1
      %s21 = sadd.s32 %s20, 1
      %p24 = scmp.eq.s32.totalorder %s12, 4
      %p25 = scmp.ne.s32.totalorder %s20, %s22
      %p26 = scmp.eq.s32.totalorder %s12, 0
      %p27 = por %p25, %p26
      %p28 = scmp.ne.s32.totalorder %s20, %s22
      %p29 = scmp.eq.s32.totalorder %s17, 4
      %p30 = por %p28, %p29
      %p31 = scmp.ne.s32.totalorder %s22, %s23
      %p32 = scmp.eq.s32.totalorder %s17, 0
      %p33 = por %p31, %p32
      %p34 = scmp.ne.s32.totalorder %s22, %s23
      %p35 = scmp.eq.s32.totalorder %s18, 4
      %p36 = por %p34, %p35
      %p38 = scmp.ne.s32.totalorder %s23, %s37
      %p39 = scmp.eq.s32.totalorder %s18, 0
      %p40 = por %p38, %p39
      %s42 = sadd.s32 %s41, 1
      %p45 = scmp.eq.s32.totalorder %s12, 4
      %p46 = scmp.ne.s32.totalorder %s41, %s43
      %p47 = scmp.eq.s32.totalorder %s12, 0
      %p48 = por %p46, %p47
      %p49 = scmp.ne.s32.totalorder %s41, %s43
      %p50 = scmp.eq.s32.totalorder %s17, 4
      %p51 = por %p49, %p50
      %p52 = scmp.ne.s32.totalorder %s43, %s44
      %p53 = scmp.eq.s32.totalorder %s17, 0
      %p54 = por %p52, %p53
      %p55 = scmp.ne.s32.totalorder %s43, %s44
      %p56 = scmp.eq.s32.totalorder %s18, 4
      %p57 = por %p55, %p56
      %p59 = scmp.ne.s32.totalorder %s44, %s58
      %p60 = scmp.eq.s32.totalorder %s18, 0
      %p61 = por %p59, %p60
      %s62 = ssub.s32 %s12, 1
      %p63 = scmp.gt.s32.totalorder %s62, 0
      %s64 = scalar_select %p63, %s62, 0
      %s65 = ssub.s32 %s19, 1
      %p66 = scmp.gt.s32.totalorder %s65, 0
      %s67 = scalar_select %p66, %s65, 0
      %s68 = ssub.s32 %s64, %s67
      %p69 = scmp.eq.s32.totalorder %s68, 0
      %s71 = sadd.s32 %s70, 1
      %s72 = scalar_select %p69, %s70, %s71
      %p75 = pneg %p69
      %p76 = scmp.eq.s32.totalorder %s12, 4
      %p77 = por %p75, %p76
      %p78 = scmp.ne.s32.totalorder %s70, %s73
      %p79 = scmp.eq.s32.totalorder %s12, 0
      %p80 = por %p78, %p79
      %p81 = scmp.ne.s32.totalorder %s70, %s73
      %p82 = scmp.eq.s32.totalorder %s17, 4
      %p83 = por %p81, %p82
      %p84 = scmp.ne.s32.totalorder %s73, %s74
      %p85 = scmp.eq.s32.totalorder %s17, 0
      %p86 = por %p84, %p85
      %p87 = scmp.ne.s32.totalorder %s73, %s74
      %p88 = scmp.eq.s32.totalorder %s18, 4
      %p89 = por %p87, %p88
      %p91 = scmp.ne.s32.totalorder %s74, %s90
      %p92 = scmp.eq.s32.totalorder %s18, 0
      %p93 = por %p91, %p92
      %s94 = ssub.s32 %s12, %s19
      %p95 = scmp.eq.s32.totalorder %s94, 0
      %s97 = sadd.s32 %s96, 1
      %s98 = scalar_select %p95, %s96, %s97
      %p101 = pneg %p95
      %p102 = scmp.eq.s32.totalorder %s12, 4
      %p103 = por %p101, %p102
      %p104 = scmp.ne.s32.totalorder %s96, %s99
      %p105 = scmp.eq.s32.totalorder %s12, 0
      %p106 = por %p104, %p105
      %p107 = scmp.ne.s32.totalorder %s96, %s99
      %p108 = scmp.eq.s32.totalorder %s17, 4
      %p109 = por %p107, %p108
      %p110 = scmp.ne.s32.totalorder %s99, %s100
      %p111 = scmp.eq.s32.totalorder %s17, 0
      %p112 = por %p110, %p111
      %p113 = scmp.ne.s32.totalorder %s99, %s100
      %p114 = scmp.eq.s32.totalorder %s18, 4
      %p115 = por %p113, %p114
      %p117 = scmp.ne.s32.totalorder %s100, %s116
      %p118 = scmp.eq.s32.totalorder %s18, 0
      %p119 = por %p117, %p118
      %p120 = scmp.le.s32.totalorder 1, %s12
      %p121 = scmp.lt.s32.totalorder %s12, 6
      %p122 = pnand %p120, %p121
      %p123 = pneg %p122
      // Predicated region
      $region9: #{memory_moco_forward.1} parent=5 // pred_check
        _
      $region10: #{memory_moco_forward.1} parent=5 // pred_check_branch
        %125 = sbr.rel (%p122) target = $region12
      $region11: #{memory_moco_forward.1} parent=5 // pred_region
        %s126 = ssub.s32 %s12, 1
        // Predicated region
        $region13: #{memory_moco_forward.1} parent=11 // pred_check
          %p127 = pneg %p33
        $region14: #{memory_moco_forward.1} parent=11 // pred_check_branch
          %129 = sbr.rel (%p127) target = $region16
        $region15: #{memory_moco_forward.1} parent=11 // pred_region
          _
        $region16: #{memory_moco_forward.1} parent=11 // pred_fallthru
          _
        // Predicated region
        $region17: #{memory_moco_forward.1} parent=11 // pred_check
          %p130 = pneg %p54
        $region18: #{memory_moco_forward.1} parent=11 // pred_check_branch
          %132 = sbr.rel (%p130) target = $region20
        $region19: #{memory_moco_forward.1} parent=11 // pred_region
          _
        $region20: #{memory_moco_forward.1} parent=11 // pred_fallthru
          _
      $region12: #{memory_moco_forward.1} parent=5 // pred_fallthru
        _
      %p133 = scmp.lt.s32.totalorder %s12, 5
      // Predicated region
      $region21: #{memory_moco_forward.1} parent=5 // pred_check
        %p134 = pneg %p133
      $region22: #{memory_moco_forward.1} parent=5 // pred_check_branch
        %136 = sbr.rel (%p134) target = $region24
      $region23: #{memory_moco_forward.1} parent=5 // pred_region
        // Predicated region
        $region25: #{memory_moco_forward.1} parent=23 // pred_check
          %p137 = pneg %p80
        $region26: #{memory_moco_forward.1} parent=23 // pred_check_branch
          %139 = sbr.rel (%p137) target = $region28
        $region27: #{memory_moco_forward.1} parent=23 // pred_region
          %s140 = sand.u32 %s70, 1
          %s141 = scalar_lea.sflag [#allocation3], %s140
          %s142 = sand.u32 %s70, 1
          %s143 = smul.addr %s142, 1024
          %s144 = scalar_lea.vmem [#allocation2], %s143
          %s145 = ssub.s32 %s12, 1
          %p146 = scmp.gt.s32.totalorder %s145, 0
          %s147 = scalar_select %p146, %s145, 0
          %s148 = smul.u32 256, %s147
          %s150 = ssub.s32 16384, 16384
          %151 = vsyncadd %s141, %s150
          %s152 = smul.addr %s148, 64
          %s153 = scalar_lea.hbm %s2, %s152
          %s154 = sshll.u32 %s144, 4
          %s155 = int_to_ptr.vmem [resolvable:$true] %s154
          %160 = dma.hbm_to_vmem [thread:$0]  %s153, 16384, %s155, %s141, 64, 64, 4
        $region28: #{memory_moco_forward.1} parent=23 // pred_fallthru
          _
      $region24: #{memory_moco_forward.1} parent=5 // pred_fallthru
        _
      %p161 = scmp.le.s32.totalorder 1, %s12
      %p162 = scmp.lt.s32.totalorder %s12, 6
      %p163 = pnand %p161, %p162
      %p164 = pneg %p163
      // Predicated region
      $region29: #{memory_moco_forward.1} parent=5 // pred_check
        _
      $region30: #{memory_moco_forward.1} parent=5 // pred_check_branch
        %166 = sbr.rel (%p163) target = $region32
      $region31: #{memory_moco_forward.1} parent=5 // pred_region
        %s167 = ssub.s32 %s12, 1
        %s168 = sand.u32 %s73, 1
        %s169 = scalar_lea.sflag [#allocation3], %s168
        %s170 = sand.u32 %s73, 1
        %s171 = smul.addr %s170, 1024
        %s172 = scalar_lea.vmem [#allocation2], %s171
        // Predicated region
        $region33: #{memory_moco_forward.1} parent=31 // pred_check
          %p173 = pneg %p86
        $region34: #{memory_moco_forward.1} parent=31 // pred_check_branch
          %175 = sbr.rel (%p173) target = $region36
        $region35: #{memory_moco_forward.1} parent=31 // pred_region
          %176 = dma.done %s169, 16384
        $region36: #{memory_moco_forward.1} parent=31 // pred_fallthru
          _
        %p177 = pneg %p33
        %p178 = pneg %p30
        %p179 = pneg %p54
        %p180 = pneg %p51
        %s181 = sand.u32 %s73, 1
        %s182 = scalar_lea.sflag [#allocation3], %s181
        %s183 = sand.u32 %s73, 1
        %s184 = smul.addr %s183, 1024
        %s185 = scalar_lea.vmem [#allocation2], %s184
        %p186 = pneg %p86
        %p187 = pneg %p83
        %p188 = pneg %p112
        %p189 = pneg %p109
        %s190 = smul.u32 16, %s17
        %p191 = scmp.lt.s32.totalorder %s190, 79
        %s192 = scalar_select %p191, %s190, 79
        %s193 = smul.addr %s192, 8
        %s194 = scalar_lea.vmem %s3, %s193
        %s195 = ssub.s32 %s17, 1
        %p196 = scmp.gt.s32.totalorder %s195, 0
        %s197 = scalar_select %p196, %s195, 0
        %s198 = smul.u32 256, %s197
        %s199 = smul.u32 16, %s17
        %p200 = scmp.lt.s32.totalorder %s199, 79
        %s201 = scalar_select %p200, %s199, 79
        %s202 = smul.addr %s201, 8
        %s203 = scalar_lea.vmem %s3, %s202
        %s204 = smul.u32 16, %s17
        %p206 = scmp.eq.s32.totalorder %s17, 0
        // Predicated region
        $region37: #{memory_moco_forward.1} parent=31 // pred_check
          %p207 = pneg %p206
        $region38: #{memory_moco_forward.1} parent=31 // pred_check_branch
          %209 = sbr.rel (%p207) target = $region40
        $region39: #{memory_moco_forward.1} parent=31 // pred_region
          %v210 = vlaneseq
          %v211 = vand.u32 %v210, 127
          %v212 = vadd.s32 %v211, 128
          %v213 = vadd.s32 %v211, 256
          %v214 = vadd.s32 %v211, 384
          %v215 = vadd.s32 %v211, 512
          %v216 = vadd.s32 %v211, 640
          %v217 = vadd.s32 %v211, 768
          %v218 = vadd.s32 %v211, 896
          %v219 = vadd.s32 %v211, 1024
          %v220 = vadd.s32 %v211, 1152
          %v221 = vadd.s32 %v211, 1280
          %v222 = vadd.s32 %v211, 1408
          %v223 = vadd.s32 %v211, 1536
          %v224 = vadd.s32 %v211, 1664
          %v225 = vadd.s32 %v211, 1792
          %v226 = vadd.s32 %v211, 1920
          %vm227 = vcmp.eq.s32.totalorder %v211, 2047
          %vm228 = vcmp.eq.s32.totalorder %v212, 2047
          %vm229 = vcmp.eq.s32.totalorder %v213, 2047
          %vm230 = vcmp.eq.s32.totalorder %v214, 2047
          %vm231 = vcmp.eq.s32.totalorder %v215, 2047
          %vm232 = vcmp.eq.s32.totalorder %v216, 2047
          %vm233 = vcmp.eq.s32.totalorder %v217, 2047
          %vm234 = vcmp.eq.s32.totalorder %v218, 2047
          %vm235 = vcmp.eq.s32.totalorder %v219, 2047
          %vm236 = vcmp.eq.s32.totalorder %v220, 2047
          %vm237 = vcmp.eq.s32.totalorder %v221, 2047
          %vm238 = vcmp.eq.s32.totalorder %v222, 2047
          %vm239 = vcmp.eq.s32.totalorder %v223, 2047
          %vm240 = vcmp.eq.s32.totalorder %v224, 2047
          %vm241 = vcmp.eq.s32.totalorder %v225, 2047
          %vm242 = vcmp.eq.s32.totalorder %v226, 2047
          %v243 = vld [vmem:[%s1] sm:$0xff]
          %245 = vset.pattern.permute.xlu0 0
          %246 = vperm.xlu0 %245, %v243
          %v247 = vpop.permute.xlu0 %246
          %v249 = vsel %vm227, %v247, 0.0
          %v250 = vsel %vm228, %v247, 0.0
          %v251 = vsel %vm229, %v247, 0.0
          %v252 = vsel %vm230, %v247, 0.0
          %v253 = vsel %vm231, %v247, 0.0
          %v254 = vsel %vm232, %v247, 0.0
          %v255 = vsel %vm233, %v247, 0.0
          %v256 = vsel %vm234, %v247, 0.0
          %v257 = vsel %vm235, %v247, 0.0
          %v258 = vsel %vm236, %v247, 0.0
          %v259 = vsel %vm237, %v247, 0.0
          %v260 = vsel %vm238, %v247, 0.0
          %v261 = vsel %vm239, %v247, 0.0
          %v262 = vsel %vm240, %v247, 0.0
          %v263 = vsel %vm241, %v247, 0.0
          %v264 = vsel %vm242, %v247, 0.0
          %265 = vst [vmem:[%s203] sm:$0xff] %v249
          %266 = vst [vmem:[%s203 + $0x8] sm:$0xff] %v250
          %267 = vst [vmem:[%s203 + $0x10] sm:$0xff] %v251
          %268 = vst [vmem:[%s203 + $0x18] sm:$0xff] %v252
          %269 = vst [vmem:[%s203 + $0x20] sm:$0xff] %v253
          %270 = vst [vmem:[%s203 + $0x28] sm:$0xff] %v254
          %271 = vst [vmem:[%s203 + $0x30] sm:$0xff] %v255
          %272 = vst [vmem:[%s203 + $0x38] sm:$0xff] %v256
          %273 = vst [vmem:[%s203 + $0x40] sm:$0xff] %v257
          %274 = vst [vmem:[%s203 + $0x48] sm:$0xff] %v258
          %275 = vst [vmem:[%s203 + $0x50] sm:$0xff] %v259
          %276 = vst [vmem:[%s203 + $0x58] sm:$0xff] %v260
          %277 = vst [vmem:[%s203 + $0x60] sm:$0xff] %v261
          %278 = vst [vmem:[%s203 + $0x68] sm:$0xff] %v262
          %279 = vst [vmem:[%s203 + $0x70] sm:$0xff] %v263
          %280 = vst [vmem:[%s203 + $0x78] sm:$0xff] %v264
        $region40: #{memory_moco_forward.1} parent=31 // pred_fallthru
          _
        %p281 = scmp.gt.s32.totalorder %s17, 0
        // Predicated region
        $region41: #{memory_moco_forward.1} parent=31 // pred_check
          %p282 = pneg %p281
        $region42: #{memory_moco_forward.1} parent=31 // pred_check_branch
          %284 = sbr.rel (%p282) target = $region44
        $region43: #{memory_moco_forward.1} parent=31 // pred_region
          %v285 = vld [vmem:[%s0] sm:$0xf]
          %v286 = vld [vmem:[%s172] sm:$0xf]
          %v287 = vld [vmem:[%s172 + $0x4] sm:$0xf]
          %v288 = vld [vmem:[%s172 + $0x8] sm:$0xf]
          %v289 = vld [vmem:[%s172 + $0xc] sm:$0xf]
          %v290 = vld [vmem:[%s172 + $0x10] sm:$0xf]
          %v291 = vld [vmem:[%s172 + $0x14] sm:$0xf]
          %v292 = vld [vmem:[%s172 + $0x18] sm:$0xf]
          %v293 = vld [vmem:[%s172 + $0x1c] sm:$0xf]
          %v294 = vld [vmem:[%s172 + $0x20] sm:$0xf]
          %v295 = vld [vmem:[%s172 + $0x24] sm:$0xf]
          %v296 = vld [vmem:[%s172 + $0x28] sm:$0xf]
          %v297 = vld [vmem:[%s172 + $0x2c] sm:$0xf]
          %v298 = vld [vmem:[%s172 + $0x30] sm:$0xf]
          %v299 = vld [vmem:[%s172 + $0x34] sm:$0xf]
          %v300 = vld [vmem:[%s172 + $0x38] sm:$0xf]
          %v301 = vld [vmem:[%s172 + $0x3c] sm:$0xf]
          %v302 = vld [vmem:[%s172 + $0x40] sm:$0xf]
          %v303 = vld [vmem:[%s172 + $0x44] sm:$0xf]
          %v304 = vld [vmem:[%s172 + $0x48] sm:$0xf]
          %v305 = vld [vmem:[%s172 + $0x4c] sm:$0xf]
          %v306 = vld [vmem:[%s172 + $0x50] sm:$0xf]
          %v307 = vld [vmem:[%s172 + $0x54] sm:$0xf]
          %v308 = vld [vmem:[%s172 + $0x58] sm:$0xf]
          %v309 = vld [vmem:[%s172 + $0x5c] sm:$0xf]
          %v310 = vld [vmem:[%s172 + $0x60] sm:$0xf]
          %v311 = vld [vmem:[%s172 + $0x64] sm:$0xf]
          %v312 = vld [vmem:[%s172 + $0x68] sm:$0xf]
          %v313 = vld [vmem:[%s172 + $0x6c] sm:$0xf]
          %v314 = vld [vmem:[%s172 + $0x70] sm:$0xf]
          %v315 = vld [vmem:[%s172 + $0x74] sm:$0xf]
          %v316 = vld [vmem:[%s172 + $0x78] sm:$0xf]
          %v317 = vld [vmem:[%s172 + $0x7c] sm:$0xf]
          %v318 = vld [vmem:[%s172 + $0x80] sm:$0xf]
          %v319 = vld [vmem:[%s172 + $0x84] sm:$0xf]
          %v320 = vld [vmem:[%s172 + $0x88] sm:$0xf]
          %v321 = vld [vmem:[%s172 + $0x8c] sm:$0xf]
          %v322 = vld [vmem:[%s172 + $0x90] sm:$0xf]
          %v323 = vld [vmem:[%s172 + $0x94] sm:$0xf]
          %v324 = vld [vmem:[%s172 + $0x98] sm:$0xf]
          %v325 = vld [vmem:[%s172 + $0x9c] sm:$0xf]
          %v326 = vld [vmem:[%s172 + $0xa0] sm:$0xf]
          %v327 = vld [vmem:[%s172 + $0xa4] sm:$0xf]
          %v328 = vld [vmem:[%s172 + $0xa8] sm:$0xf]
          %v329 = vld [vmem:[%s172 + $0xac] sm:$0xf]
          %v330 = vld [vmem:[%s172 + $0xb0] sm:$0xf]
          %v331 = vld [vmem:[%s172 + $0xb4] sm:$0xf]
          %v332 = vld [vmem:[%s172 + $0xb8] sm:$0xf]
          %v333 = vld [vmem:[%s172 + $0xbc] sm:$0xf]
          %v334 = vld [vmem:[%s172 + $0xc0] sm:$0xf]
          %v335 = vld [vmem:[%s172 + $0xc4] sm:$0xf]
          %v336 = vld [vmem:[%s172 + $0xc8] sm:$0xf]
          %v337 = vld [vmem:[%s172 + $0xcc] sm:$0xf]
          %v338 = vld [vmem:[%s172 + $0xd0] sm:$0xf]
          %v339 = vld [vmem:[%s172 + $0xd4] sm:$0xf]
          %v340 = vld [vmem:[%s172 + $0xd8] sm:$0xf]
          %v341 = vld [vmem:[%s172 + $0xdc] sm:$0xf]
          %v342 = vld [vmem:[%s172 + $0xe0] sm:$0xf]
          %v343 = vld [vmem:[%s172 + $0xe4] sm:$0xf]
          %v344 = vld [vmem:[%s172 + $0xe8] sm:$0xf]
          %v345 = vld [vmem:[%s172 + $0xec] sm:$0xf]
          %v346 = vld [vmem:[%s172 + $0xf0] sm:$0xf]
          %v347 = vld [vmem:[%s172 + $0xf4] sm:$0xf]
          %v348 = vld [vmem:[%s172 + $0xf8] sm:$0xf]
          %v349 = vld [vmem:[%s172 + $0xfc] sm:$0xf]
          %v350 = vld [vmem:[%s172 + $0x100] sm:$0xf]
          %v351 = vld [vmem:[%s172 + $0x104] sm:$0xf]
          %v352 = vld [vmem:[%s172 + $0x108] sm:$0xf]
          %v353 = vld [vmem:[%s172 + $0x10c] sm:$0xf]
          %v354 = vld [vmem:[%s172 + $0x110] sm:$0xf]
          %v355 = vld [vmem:[%s172 + $0x114] sm:$0xf]
          %v356 = vld [vmem:[%s172 + $0x118] sm:$0xf]
          %v357 = vld [vmem:[%s172 + $0x11c] sm:$0xf]
          %v358 = vld [vmem:[%s172 + $0x120] sm:$0xf]
          %v359 = vld [vmem:[%s172 + $0x124] sm:$0xf]
          %v360 = vld [vmem:[%s172 + $0x128] sm:$0xf]
          %v361 = vld [vmem:[%s172 + $0x12c] sm:$0xf]
          %v362 = vld [vmem:[%s172 + $0x130] sm:$0xf]
          %v363 = vld [vmem:[%s172 + $0x134] sm:$0xf]
          %v364 = vld [vmem:[%s172 + $0x138] sm:$0xf]
          %v365 = vld [vmem:[%s172 + $0x13c] sm:$0xf]
          %v366 = vld [vmem:[%s172 + $0x140] sm:$0xf]
          %v367 = vld [vmem:[%s172 + $0x144] sm:$0xf]
          %v368 = vld [vmem:[%s172 + $0x148] sm:$0xf]
          %v369 = vld [vmem:[%s172 + $0x14c] sm:$0xf]
          %v370 = vld [vmem:[%s172 + $0x150] sm:$0xf]
          %v371 = vld [vmem:[%s172 + $0x154] sm:$0xf]
          %v372 = vld [vmem:[%s172 + $0x158] sm:$0xf]
          %v373 = vld [vmem:[%s172 + $0x15c] sm:$0xf]
          %v374 = vld [vmem:[%s172 + $0x160] sm:$0xf]
          %v375 = vld [vmem:[%s172 + $0x164] sm:$0xf]
          %v376 = vld [vmem:[%s172 + $0x168] sm:$0xf]
          %v377 = vld [vmem:[%s172 + $0x16c] sm:$0xf]
          %v378 = vld [vmem:[%s172 + $0x170] sm:$0xf]
          %v379 = vld [vmem:[%s172 + $0x174] sm:$0xf]
          %v380 = vld [vmem:[%s172 + $0x178] sm:$0xf]
          %v381 = vld [vmem:[%s172 + $0x17c] sm:$0xf]
          %v382 = vld [vmem:[%s172 + $0x180] sm:$0xf]
          %v383 = vld [vmem:[%s172 + $0x184] sm:$0xf]
          %v384 = vld [vmem:[%s172 + $0x188] sm:$0xf]
          %v385 = vld [vmem:[%s172 + $0x18c] sm:$0xf]
          %v386 = vld [vmem:[%s172 + $0x190] sm:$0xf]
          %v387 = vld [vmem:[%s172 + $0x194] sm:$0xf]
          %v388 = vld [vmem:[%s172 + $0x198] sm:$0xf]
          %v389 = vld [vmem:[%s172 + $0x19c] sm:$0xf]
          %v390 = vld [vmem:[%s172 + $0x1a0] sm:$0xf]
          %v391 = vld [vmem:[%s172 + $0x1a4] sm:$0xf]
          %v392 = vld [vmem:[%s172 + $0x1a8] sm:$0xf]
          %v393 = vld [vmem:[%s172 + $0x1ac] sm:$0xf]
          %v394 = vld [vmem:[%s172 + $0x1b0] sm:$0xf]
          %v395 = vld [vmem:[%s172 + $0x1b4] sm:$0xf]
          %v396 = vld [vmem:[%s172 + $0x1b8] sm:$0xf]
          %v397 = vld [vmem:[%s172 + $0x1bc] sm:$0xf]
          %v398 = vld [vmem:[%s172 + $0x1c0] sm:$0xf]
          %v399 = vld [vmem:[%s172 + $0x1c4] sm:$0xf]
          %v400 = vld [vmem:[%s172 + $0x1c8] sm:$0xf]
          %v401 = vld [vmem:[%s172 + $0x1cc] sm:$0xf]
          %v402 = vld [vmem:[%s172 + $0x1d0] sm:$0xf]
          %v403 = vld [vmem:[%s172 + $0x1d4] sm:$0xf]
          %v404 = vld [vmem:[%s172 + $0x1d8] sm:$0xf]
          %v405 = vld [vmem:[%s172 + $0x1dc] sm:$0xf]
          %v406 = vld [vmem:[%s172 + $0x1e0] sm:$0xf]
          %v407 = vld [vmem:[%s172 + $0x1e4] sm:$0xf]
          %v408 = vld [vmem:[%s172 + $0x1e8] sm:$0xf]
          %v409 = vld [vmem:[%s172 + $0x1ec] sm:$0xf]
          %v410 = vld [vmem:[%s172 + $0x1f0] sm:$0xf]
          %v411 = vld [vmem:[%s172 + $0x1f4] sm:$0xf]
          %v412 = vld [vmem:[%s172 + $0x1f8] sm:$0xf]
          %v413 = vld [vmem:[%s172 + $0x1fc] sm:$0xf]
          %v414 = vld [vmem:[%s172 + $0x200] sm:$0xf]
          %v415 = vld [vmem:[%s172 + $0x204] sm:$0xf]
          %v416 = vld [vmem:[%s172 + $0x208] sm:$0xf]
          %v417 = vld [vmem:[%s172 + $0x20c] sm:$0xf]
          %v418 = vld [vmem:[%s172 + $0x210] sm:$0xf]
          %v419 = vld [vmem:[%s172 + $0x214] sm:$0xf]
          %v420 = vld [vmem:[%s172 + $0x218] sm:$0xf]
          %v421 = vld [vmem:[%s172 + $0x21c] sm:$0xf]
          %v422 = vld [vmem:[%s172 + $0x220] sm:$0xf]
          %v423 = vld [vmem:[%s172 + $0x224] sm:$0xf]
          %v424 = vld [vmem:[%s172 + $0x228] sm:$0xf]
          %v425 = vld [vmem:[%s172 + $0x22c] sm:$0xf]
          %v426 = vld [vmem:[%s172 + $0x230] sm:$0xf]
          %v427 = vld [vmem:[%s172 + $0x234] sm:$0xf]
          %v428 = vld [vmem:[%s172 + $0x238] sm:$0xf]
          %v429 = vld [vmem:[%s172 + $0x23c] sm:$0xf]
          %v430 = vld [vmem:[%s172 + $0x240] sm:$0xf]
          %v431 = vld [vmem:[%s172 + $0x244] sm:$0xf]
          %v432 = vld [vmem:[%s172 + $0x248] sm:$0xf]
          %v433 = vld [vmem:[%s172 + $0x24c] sm:$0xf]
          %v434 = vld [vmem:[%s172 + $0x250] sm:$0xf]
          %v435 = vld [vmem:[%s172 + $0x254] sm:$0xf]
          %v436 = vld [vmem:[%s172 + $0x258] sm:$0xf]
          %v437 = vld [vmem:[%s172 + $0x25c] sm:$0xf]
          %v438 = vld [vmem:[%s172 + $0x260] sm:$0xf]
          %v439 = vld [vmem:[%s172 + $0x264] sm:$0xf]
          %v440 = vld [vmem:[%s172 + $0x268] sm:$0xf]
          %v441 = vld [vmem:[%s172 + $0x26c] sm:$0xf]
          %v442 = vld [vmem:[%s172 + $0x270] sm:$0xf]
          %v443 = vld [vmem:[%s172 + $0x274] sm:$0xf]
          %v444 = vld [vmem:[%s172 + $0x278] sm:$0xf]
          %v445 = vld [vmem:[%s172 + $0x27c] sm:$0xf]
          %v446 = vld [vmem:[%s172 + $0x280] sm:$0xf]
          %v447 = vld [vmem:[%s172 + $0x284] sm:$0xf]
          %v448 = vld [vmem:[%s172 + $0x288] sm:$0xf]
          %v449 = vld [vmem:[%s172 + $0x28c] sm:$0xf]
          %v450 = vld [vmem:[%s172 + $0x290] sm:$0xf]
          %v451 = vld [vmem:[%s172 + $0x294] sm:$0xf]
          %v452 = vld [vmem:[%s172 + $0x298] sm:$0xf]
          %v453 = vld [vmem:[%s172 + $0x29c] sm:$0xf]
          %v454 = vld [vmem:[%s172 + $0x2a0] sm:$0xf]
          %v455 = vld [vmem:[%s172 + $0x2a4] sm:$0xf]
          %v456 = vld [vmem:[%s172 + $0x2a8] sm:$0xf]
          %v457 = vld [vmem:[%s172 + $0x2ac] sm:$0xf]
          %v458 = vld [vmem:[%s172 + $0x2b0] sm:$0xf]
          %v459 = vld [vmem:[%s172 + $0x2b4] sm:$0xf]
          %v460 = vld [vmem:[%s172 + $0x2b8] sm:$0xf]
          %v461 = vld [vmem:[%s172 + $0x2bc] sm:$0xf]
          %v462 = vld [vmem:[%s172 + $0x2c0] sm:$0xf]
          %v463 = vld [vmem:[%s172 + $0x2c4] sm:$0xf]
          %v464 = vld [vmem:[%s172 + $0x2c8] sm:$0xf]
          %v465 = vld [vmem:[%s172 + $0x2cc] sm:$0xf]
          %v466 = vld [vmem:[%s172 + $0x2d0] sm:$0xf]
          %v467 = vld [vmem:[%s172 + $0x2d4] sm:$0xf]
          %v468 = vld [vmem:[%s172 + $0x2d8] sm:$0xf]
          %v469 = vld [vmem:[%s172 + $0x2dc] sm:$0xf]
          %v470 = vld [vmem:[%s172 + $0x2e0] sm:$0xf]
          %v471 = vld [vmem:[%s172 + $0x2e4] sm:$0xf]
          %v472 = vld [vmem:[%s172 + $0x2e8] sm:$0xf]
          %v473 = vld [vmem:[%s172 + $0x2ec] sm:$0xf]
          %v474 = vld [vmem:[%s172 + $0x2f0] sm:$0xf]
          %v475 = vld [vmem:[%s172 + $0x2f4] sm:$0xf]
          %v476 = vld [vmem:[%s172 + $0x2f8] sm:$0xf]
          %v477 = vld [vmem:[%s172 + $0x2fc] sm:$0xf]
          %v478 = vld [vmem:[%s172 + $0x300] sm:$0xf]
          %v479 = vld [vmem:[%s172 + $0x304] sm:$0xf]
          %v480 = vld [vmem:[%s172 + $0x308] sm:$0xf]
          %v481 = vld [vmem:[%s172 + $0x30c] sm:$0xf]
          %v482 = vld [vmem:[%s172 + $0x310] sm:$0xf]
          %v483 = vld [vmem:[%s172 + $0x314] sm:$0xf]
          %v484 = vld [vmem:[%s172 + $0x318] sm:$0xf]
          %v485 = vld [vmem:[%s172 + $0x31c] sm:$0xf]
          %v486 = vld [vmem:[%s172 + $0x320] sm:$0xf]
          %v487 = vld [vmem:[%s172 + $0x324] sm:$0xf]
          %v488 = vld [vmem:[%s172 + $0x328] sm:$0xf]
          %v489 = vld [vmem:[%s172 + $0x32c] sm:$0xf]
          %v490 = vld [vmem:[%s172 + $0x330] sm:$0xf]
          %v491 = vld [vmem:[%s172 + $0x334] sm:$0xf]
          %v492 = vld [vmem:[%s172 + $0x338] sm:$0xf]
          %v493 = vld [vmem:[%s172 + $0x33c] sm:$0xf]
          %v494 = vld [vmem:[%s172 + $0x340] sm:$0xf]
          %v495 = vld [vmem:[%s172 + $0x344] sm:$0xf]
          %v496 = vld [vmem:[%s172 + $0x348] sm:$0xf]
          %v497 = vld [vmem:[%s172 + $0x34c] sm:$0xf]
          %v498 = vld [vmem:[%s172 + $0x350] sm:$0xf]
          %v499 = vld [vmem:[%s172 + $0x354] sm:$0xf]
          %v500 = vld [vmem:[%s172 + $0x358] sm:$0xf]
          %v501 = vld [vmem:[%s172 + $0x35c] sm:$0xf]
          %v502 = vld [vmem:[%s172 + $0x360] sm:$0xf]
          %v503 = vld [vmem:[%s172 + $0x364] sm:$0xf]
          %v504 = vld [vmem:[%s172 + $0x368] sm:$0xf]
          %v505 = vld [vmem:[%s172 + $0x36c] sm:$0xf]
          %v506 = vld [vmem:[%s172 + $0x370] sm:$0xf]
          %v507 = vld [vmem:[%s172 + $0x374] sm:$0xf]
          %v508 = vld [vmem:[%s172 + $0x378] sm:$0xf]
          %v509 = vld [vmem:[%s172 + $0x37c] sm:$0xf]
          %v510 = vld [vmem:[%s172 + $0x380] sm:$0xf]
          %v511 = vld [vmem:[%s172 + $0x384] sm:$0xf]
          %v512 = vld [vmem:[%s172 + $0x388] sm:$0xf]
          %v513 = vld [vmem:[%s172 + $0x38c] sm:$0xf]
          %v514 = vld [vmem:[%s172 + $0x390] sm:$0xf]
          %v515 = vld [vmem:[%s172 + $0x394] sm:$0xf]
          %v516 = vld [vmem:[%s172 + $0x398] sm:$0xf]
          %v517 = vld [vmem:[%s172 + $0x39c] sm:$0xf]
          %v518 = vld [vmem:[%s172 + $0x3a0] sm:$0xf]
          %v519 = vld [vmem:[%s172 + $0x3a4] sm:$0xf]
          %v520 = vld [vmem:[%s172 + $0x3a8] sm:$0xf]
          %v521 = vld [vmem:[%s172 + $0x3ac] sm:$0xf]
          %v522 = vld [vmem:[%s172 + $0x3b0] sm:$0xf]
          %v523 = vld [vmem:[%s172 + $0x3b4] sm:$0xf]
          %v524 = vld [vmem:[%s172 + $0x3b8] sm:$0xf]
          %v525 = vld [vmem:[%s172 + $0x3bc] sm:$0xf]
          %v526 = vld [vmem:[%s172 + $0x3c0] sm:$0xf]
          %v527 = vld [vmem:[%s172 + $0x3c4] sm:$0xf]
          %v528 = vld [vmem:[%s172 + $0x3c8] sm:$0xf]
          %v529 = vld [vmem:[%s172 + $0x3cc] sm:$0xf]
          %v530 = vld [vmem:[%s172 + $0x3d0] sm:$0xf]
          %v531 = vld [vmem:[%s172 + $0x3d4] sm:$0xf]
          %v532 = vld [vmem:[%s172 + $0x3d8] sm:$0xf]
          %v533 = vld [vmem:[%s172 + $0x3dc] sm:$0xf]
          %v534 = vld [vmem:[%s172 + $0x3e0] sm:$0xf]
          %v535 = vld [vmem:[%s172 + $0x3e4] sm:$0xf]
          %v536 = vld [vmem:[%s172 + $0x3e8] sm:$0xf]
          %v537 = vld [vmem:[%s172 + $0x3ec] sm:$0xf]
          %v538 = vld [vmem:[%s172 + $0x3f0] sm:$0xf]
          %v539 = vld [vmem:[%s172 + $0x3f4] sm:$0xf]
          %v540 = vld [vmem:[%s172 + $0x3f8] sm:$0xf]
          %v541 = vld [vmem:[%s172 + $0x3fc] sm:$0xf]
          %v798 = vunpack.c.l.b16 %v286
          %v799 = vunpack.c.l.b16 %v287
          %v800 = vunpack.c.l.b16 %v288
          %v801 = vunpack.c.l.b16 %v289
          %v802 = vunpack.c.l.b16 %v290
          %v803 = vunpack.c.l.b16 %v291
          %v804 = vunpack.c.l.b16 %v292
          %v805 = vunpack.c.l.b16 %v293
          %v806 = vunpack.c.l.b16 %v294
          %v807 = vunpack.c.l.b16 %v295
          %v808 = vunpack.c.l.b16 %v296
          %v809 = vunpack.c.l.b16 %v297
          %v810 = vunpack.c.l.b16 %v298
          %v811 = vunpack.c.l.b16 %v299
          %v812 = vunpack.c.l.b16 %v300
          %v813 = vunpack.c.l.b16 %v301
          %v814 = vunpack.c.l.b16 %v302
          %v815 = vunpack.c.l.b16 %v303
          %v816 = vunpack.c.l.b16 %v304
          %v817 = vunpack.c.l.b16 %v305
          %v818 = vunpack.c.l.b16 %v306
          %v819 = vunpack.c.l.b16 %v307
          %v820 = vunpack.c.l.b16 %v308
          %v821 = vunpack.c.l.b16 %v309
          %v822 = vunpack.c.l.b16 %v310
          %v823 = vunpack.c.l.b16 %v311
          %v824 = vunpack.c.l.b16 %v312
          %v825 = vunpack.c.l.b16 %v313
          %v826 = vunpack.c.l.b16 %v314
          %v827 = vunpack.c.l.b16 %v315
          %v828 = vunpack.c.l.b16 %v316
          %v829 = vunpack.c.l.b16 %v317
          %v830 = vunpack.c.l.b16 %v318
          %v831 = vunpack.c.l.b16 %v319
          %v832 = vunpack.c.l.b16 %v320
          %v833 = vunpack.c.l.b16 %v321
          %v834 = vunpack.c.l.b16 %v322
          %v835 = vunpack.c.l.b16 %v323
          %v836 = vunpack.c.l.b16 %v324
          %v837 = vunpack.c.l.b16 %v325
          %v838 = vunpack.c.l.b16 %v326
          %v839 = vunpack.c.l.b16 %v327
          %v840 = vunpack.c.l.b16 %v328
          %v841 = vunpack.c.l.b16 %v329
          %v842 = vunpack.c.l.b16 %v330
          %v843 = vunpack.c.l.b16 %v331
          %v844 = vunpack.c.l.b16 %v332
          %v845 = vunpack.c.l.b16 %v333
          %v846 = vunpack.c.l.b16 %v334
          %v847 = vunpack.c.l.b16 %v335
          %v848 = vunpack.c.l.b16 %v336
          %v849 = vunpack.c.l.b16 %v337
          %v850 = vunpack.c.l.b16 %v338
          %v851 = vunpack.c.l.b16 %v339
          %v852 = vunpack.c.l.b16 %v340
          %v853 = vunpack.c.l.b16 %v341
          %v854 = vunpack.c.l.b16 %v342
          %v855 = vunpack.c.l.b16 %v343
          %v856 = vunpack.c.l.b16 %v344
          %v857 = vunpack.c.l.b16 %v345
          %v858 = vunpack.c.l.b16 %v346
          %v859 = vunpack.c.l.b16 %v347
          %v860 = vunpack.c.l.b16 %v348
          %v861 = vunpack.c.l.b16 %v349
          %v862 = vunpack.c.l.b16 %v350
          %v863 = vunpack.c.l.b16 %v351
          %v864 = vunpack.c.l.b16 %v352
          %v865 = vunpack.c.l.b16 %v353
          %v866 = vunpack.c.l.b16 %v354
          %v867 = vunpack.c.l.b16 %v355
          %v868 = vunpack.c.l.b16 %v356
          %v869 = vunpack.c.l.b16 %v357
          %v870 = vunpack.c.l.b16 %v358
          %v871 = vunpack.c.l.b16 %v359
          %v872 = vunpack.c.l.b16 %v360
          %v873 = vunpack.c.l.b16 %v361
          %v874 = vunpack.c.l.b16 %v362
          %v875 = vunpack.c.l.b16 %v363
          %v876 = vunpack.c.l.b16 %v364
          %v877 = vunpack.c.l.b16 %v365
          %v878 = vunpack.c.l.b16 %v366
          %v879 = vunpack.c.l.b16 %v367
          %v880 = vunpack.c.l.b16 %v368
          %v881 = vunpack.c.l.b16 %v369
          %v882 = vunpack.c.l.b16 %v370
          %v883 = vunpack.c.l.b16 %v371
          %v884 = vunpack.c.l.b16 %v372
          %v885 = vunpack.c.l.b16 %v373
          %v886 = vunpack.c.l.b16 %v374
          %v887 = vunpack.c.l.b16 %v375
          %v888 = vunpack.c.l.b16 %v376
          %v889 = vunpack.c.l.b16 %v377
          %v890 = vunpack.c.l.b16 %v378
          %v891 = vunpack.c.l.b16 %v379
          %v892 = vunpack.c.l.b16 %v380
          %v893 = vunpack.c.l.b16 %v381
          %v894 = vunpack.c.l.b16 %v382
          %v895 = vunpack.c.l.b16 %v383
          %v896 = vunpack.c.l.b16 %v384
          %v897 = vunpack.c.l.b16 %v385
          %v898 = vunpack.c.l.b16 %v386
          %v899 = vunpack.c.l.b16 %v387
          %v900 = vunpack.c.l.b16 %v388
          %v901 = vunpack.c.l.b16 %v389
          %v902 = vunpack.c.l.b16 %v390
          %v903 = vunpack.c.l.b16 %v391
          %v904 = vunpack.c.l.b16 %v392
          %v905 = vunpack.c.l.b16 %v393
          %v906 = vunpack.c.l.b16 %v394
          %v907 = vunpack.c.l.b16 %v395
          %v908 = vunpack.c.l.b16 %v396
          %v909 = vunpack.c.l.b16 %v397
          %v910 = vunpack.c.l.b16 %v398
          %v911 = vunpack.c.l.b16 %v399
          %v912 = vunpack.c.l.b16 %v400
          %v913 = vunpack.c.l.b16 %v401
          %v914 = vunpack.c.l.b16 %v402
          %v915 = vunpack.c.l.b16 %v403
          %v916 = vunpack.c.l.b16 %v404
          %v917 = vunpack.c.l.b16 %v405
          %v918 = vunpack.c.l.b16 %v406
          %v919 = vunpack.c.l.b16 %v407
          %v920 = vunpack.c.l.b16 %v408
          %v921 = vunpack.c.l.b16 %v409
          %v922 = vunpack.c.l.b16 %v410
          %v923 = vunpack.c.l.b16 %v411
          %v924 = vunpack.c.l.b16 %v412
          %v925 = vunpack.c.l.b16 %v413
          %v926 = vunpack.c.l.b16 %v414
          %v927 = vunpack.c.l.b16 %v415
          %v928 = vunpack.c.l.b16 %v416
          %v929 = vunpack.c.l.b16 %v417
          %v930 = vunpack.c.l.b16 %v418
          %v931 = vunpack.c.l.b16 %v419
          %v932 = vunpack.c.l.b16 %v420
          %v933 = vunpack.c.l.b16 %v421
          %v934 = vunpack.c.l.b16 %v422
          %v935 = vunpack.c.l.b16 %v423
          %v936 = vunpack.c.l.b16 %v424
          %v937 = vunpack.c.l.b16 %v425
          %v938 = vunpack.c.l.b16 %v426
          %v939 = vunpack.c.l.b16 %v427
          %v940 = vunpack.c.l.b16 %v428
          %v941 = vunpack.c.l.b16 %v429
          %v942 = vunpack.c.l.b16 %v430
          %v943 = vunpack.c.l.b16 %v431
          %v944 = vunpack.c.l.b16 %v432
          %v945 = vunpack.c.l.b16 %v433
          %v946 = vunpack.c.l.b16 %v434
          %v947 = vunpack.c.l.b16 %v435
          %v948 = vunpack.c.l.b16 %v436
          %v949 = vunpack.c.l.b16 %v437
          %v950 = vunpack.c.l.b16 %v438
          %v951 = vunpack.c.l.b16 %v439
          %v952 = vunpack.c.l.b16 %v440
          %v953 = vunpack.c.l.b16 %v441
          %v954 = vunpack.c.l.b16 %v442
          %v955 = vunpack.c.l.b16 %v443
          %v956 = vunpack.c.l.b16 %v444
          %v957 = vunpack.c.l.b16 %v445
          %v958 = vunpack.c.l.b16 %v446
          %v959 = vunpack.c.l.b16 %v447
          %v960 = vunpack.c.l.b16 %v448
          %v961 = vunpack.c.l.b16 %v449
          %v962 = vunpack.c.l.b16 %v450
          %v963 = vunpack.c.l.b16 %v451
          %v964 = vunpack.c.l.b16 %v452
          %v965 = vunpack.c.l.b16 %v453
          %v966 = vunpack.c.l.b16 %v454
          %v967 = vunpack.c.l.b16 %v455
          %v968 = vunpack.c.l.b16 %v456
          %v969 = vunpack.c.l.b16 %v457
          %v970 = vunpack.c.l.b16 %v458
          %v971 = vunpack.c.l.b16 %v459
          %v972 = vunpack.c.l.b16 %v460
          %v973 = vunpack.c.l.b16 %v461
          %v974 = vunpack.c.l.b16 %v462
          %v975 = vunpack.c.l.b16 %v463
          %v976 = vunpack.c.l.b16 %v464
          %v977 = vunpack.c.l.b16 %v465
          %v978 = vunpack.c.l.b16 %v466
          %v979 = vunpack.c.l.b16 %v467
          %v980 = vunpack.c.l.b16 %v468
          %v981 = vunpack.c.l.b16 %v469
          %v982 = vunpack.c.l.b16 %v470
          %v983 = vunpack.c.l.b16 %v471
          %v984 = vunpack.c.l.b16 %v472
          %v985 = vunpack.c.l.b16 %v473
          %v986 = vunpack.c.l.b16 %v474
          %v987 = vunpack.c.l.b16 %v475
          %v988 = vunpack.c.l.b16 %v476
          %v989 = vunpack.c.l.b16 %v477
          %v990 = vunpack.c.l.b16 %v478
          %v991 = vunpack.c.l.b16 %v479
          %v992 = vunpack.c.l.b16 %v480
          %v993 = vunpack.c.l.b16 %v481
          %v994 = vunpack.c.l.b16 %v482
          %v995 = vunpack.c.l.b16 %v483
          %v996 = vunpack.c.l.b16 %v484
          %v997 = vunpack.c.l.b16 %v485
          %v998 = vunpack.c.l.b16 %v486
          %v999 = vunpack.c.l.b16 %v487
          %v1000 = vunpack.c.l.b16 %v488
          %v1001 = vunpack.c.l.b16 %v489
          %v1002 = vunpack.c.l.b16 %v490
          %v1003 = vunpack.c.l.b16 %v491
          %v1004 = vunpack.c.l.b16 %v492
          %v1005 = vunpack.c.l.b16 %v493
          %v1006 = vunpack.c.l.b16 %v494
          %v1007 = vunpack.c.l.b16 %v495
          %v1008 = vunpack.c.l.b16 %v496
          %v1009 = vunpack.c.l.b16 %v497
          %v1010 = vunpack.c.l.b16 %v498
          %v1011 = vunpack.c.l.b16 %v499
          %v1012 = vunpack.c.l.b16 %v500
          %v1013 = vunpack.c.l.b16 %v501
          %v1014 = vunpack.c.l.b16 %v502
          %v1015 = vunpack.c.l.b16 %v503
          %v1016 = vunpack.c.l.b16 %v504
          %v1017 = vunpack.c.l.b16 %v505
          %v1018 = vunpack.c.l.b16 %v506
          %v1019 = vunpack.c.l.b16 %v507
          %v1020 = vunpack.c.l.b16 %v508
          %v1021 = vunpack.c.l.b16 %v509
          %v1022 = vunpack.c.l.b16 %v510
          %v1023 = vunpack.c.l.b16 %v511
          %v1024 = vunpack.c.l.b16 %v512
          %v1025 = vunpack.c.l.b16 %v513
          %v1026 = vunpack.c.l.b16 %v514
          %v1027 = vunpack.c.l.b16 %v515
          %v1028 = vunpack.c.l.b16 %v516
          %v1029 = vunpack.c.l.b16 %v517
          %v1030 = vunpack.c.l.b16 %v518
          %v1031 = vunpack.c.l.b16 %v519
          %v1032 = vunpack.c.l.b16 %v520
          %v1033 = vunpack.c.l.b16 %v521
          %v1034 = vunpack.c.l.b16 %v522
          %v1035 = vunpack.c.l.b16 %v523
          %v1036 = vunpack.c.l.b16 %v524
          %v1037 = vunpack.c.l.b16 %v525
          %v1038 = vunpack.c.l.b16 %v526
          %v1039 = vunpack.c.l.b16 %v527
          %v1040 = vunpack.c.l.b16 %v528
          %v1041 = vunpack.c.l.b16 %v529
          %v1042 = vunpack.c.l.b16 %v530
          %v1043 = vunpack.c.l.b16 %v531
          %v1044 = vunpack.c.l.b16 %v532
          %v1045 = vunpack.c.l.b16 %v533
          %v1046 = vunpack.c.l.b16 %v534
          %v1047 = vunpack.c.l.b16 %v535
          %v1048 = vunpack.c.l.b16 %v536
          %v1049 = vunpack.c.l.b16 %v537
          %v1050 = vunpack.c.l.b16 %v538
          %v1051 = vunpack.c.l.b16 %v539
          %v1052 = vunpack.c.l.b16 %v540
          %v1053 = vunpack.c.l.b16 %v541
          %v1054 = vpack.c.b16 %v799, %v798
          %v1055 = vpack.c.b16 %v801, %v800
          %v1056 = vpack.c.b16 %v803, %v802
          %v1057 = vpack.c.b16 %v805, %v804
          %v1058 = vpack.c.b16 %v807, %v806
          %v1059 = vpack.c.b16 %v809, %v808
          %v1060 = vpack.c.b16 %v811, %v810
          %v1061 = vpack.c.b16 %v813, %v812
          %v1062 = vpack.c.b16 %v815, %v814
          %v1063 = vpack.c.b16 %v817, %v816
          %v1064 = vpack.c.b16 %v819, %v818
          %v1065 = vpack.c.b16 %v821, %v820
          %v1066 = vpack.c.b16 %v823, %v822
          %v1067 = vpack.c.b16 %v825, %v824
          %v1068 = vpack.c.b16 %v827, %v826
          %v1069 = vpack.c.b16 %v829, %v828
          %v1070 = vpack.c.b16 %v831, %v830
          %v1071 = vpack.c.b16 %v833, %v832
          %v1072 = vpack.c.b16 %v835, %v834
          %v1073 = vpack.c.b16 %v837, %v836
          %v1074 = vpack.c.b16 %v839, %v838
          %v1075 = vpack.c.b16 %v841, %v840
          %v1076 = vpack.c.b16 %v843, %v842
          %v1077 = vpack.c.b16 %v845, %v844
          %v1078 = vpack.c.b16 %v847, %v846
          %v1079 = vpack.c.b16 %v849, %v848
          %v1080 = vpack.c.b16 %v851, %v850
          %v1081 = vpack.c.b16 %v853, %v852
          %v1082 = vpack.c.b16 %v855, %v854
          %v1083 = vpack.c.b16 %v857, %v856
          %v1084 = vpack.c.b16 %v859, %v858
          %v1085 = vpack.c.b16 %v861, %v860
          %v1086 = vpack.c.b16 %v863, %v862
          %v1087 = vpack.c.b16 %v865, %v864
          %v1088 = vpack.c.b16 %v867, %v866
          %v1089 = vpack.c.b16 %v869, %v868
          %v1090 = vpack.c.b16 %v871, %v870
          %v1091 = vpack.c.b16 %v873, %v872
          %v1092 = vpack.c.b16 %v875, %v874
          %v1093 = vpack.c.b16 %v877, %v876
          %v1094 = vpack.c.b16 %v879, %v878
          %v1095 = vpack.c.b16 %v881, %v880
          %v1096 = vpack.c.b16 %v883, %v882
          %v1097 = vpack.c.b16 %v885, %v884
          %v1098 = vpack.c.b16 %v887, %v886
          %v1099 = vpack.c.b16 %v889, %v888
          %v1100 = vpack.c.b16 %v891, %v890
          %v1101 = vpack.c.b16 %v893, %v892
          %v1102 = vpack.c.b16 %v895, %v894
          %v1103 = vpack.c.b16 %v897, %v896
          %v1104 = vpack.c.b16 %v899, %v898
          %v1105 = vpack.c.b16 %v901, %v900
          %v1106 = vpack.c.b16 %v903, %v902
          %v1107 = vpack.c.b16 %v905, %v904
          %v1108 = vpack.c.b16 %v907, %v906
          %v1109 = vpack.c.b16 %v909, %v908
          %v1110 = vpack.c.b16 %v911, %v910
          %v1111 = vpack.c.b16 %v913, %v912
          %v1112 = vpack.c.b16 %v915, %v914
          %v1113 = vpack.c.b16 %v917, %v916
          %v1114 = vpack.c.b16 %v919, %v918
          %v1115 = vpack.c.b16 %v921, %v920
          %v1116 = vpack.c.b16 %v923, %v922
          %v1117 = vpack.c.b16 %v925, %v924
          %v1118 = vpack.c.b16 %v927, %v926
          %v1119 = vpack.c.b16 %v929, %v928
          %v1120 = vpack.c.b16 %v931, %v930
          %v1121 = vpack.c.b16 %v933, %v932
          %v1122 = vpack.c.b16 %v935, %v934
          %v1123 = vpack.c.b16 %v937, %v936
          %v1124 = vpack.c.b16 %v939, %v938
          %v1125 = vpack.c.b16 %v941, %v940
          %v1126 = vpack.c.b16 %v943, %v942
          %v1127 = vpack.c.b16 %v945, %v944
          %v1128 = vpack.c.b16 %v947, %v946
          %v1129 = vpack.c.b16 %v949, %v948
          %v1130 = vpack.c.b16 %v951, %v950
          %v1131 = vpack.c.b16 %v953, %v952
          %v1132 = vpack.c.b16 %v955, %v954
          %v1133 = vpack.c.b16 %v957, %v956
          %v1134 = vpack.c.b16 %v959, %v958
          %v1135 = vpack.c.b16 %v961, %v960
          %v1136 = vpack.c.b16 %v963, %v962
          %v1137 = vpack.c.b16 %v965, %v964
          %v1138 = vpack.c.b16 %v967, %v966
          %v1139 = vpack.c.b16 %v969, %v968
          %v1140 = vpack.c.b16 %v971, %v970
          %v1141 = vpack.c.b16 %v973, %v972
          %v1142 = vpack.c.b16 %v975, %v974
          %v1143 = vpack.c.b16 %v977, %v976
          %v1144 = vpack.c.b16 %v979, %v978
          %v1145 = vpack.c.b16 %v981, %v980
          %v1146 = vpack.c.b16 %v983, %v982
          %v1147 = vpack.c.b16 %v985, %v984
          %v1148 = vpack.c.b16 %v987, %v986
          %v1149 = vpack.c.b16 %v989, %v988
          %v1150 = vpack.c.b16 %v991, %v990
          %v1151 = vpack.c.b16 %v993, %v992
          %v1152 = vpack.c.b16 %v995, %v994
          %v1153 = vpack.c.b16 %v997, %v996
          %v1154 = vpack.c.b16 %v999, %v998
          %v1155 = vpack.c.b16 %v1001, %v1000
          %v1156 = vpack.c.b16 %v1003, %v1002
          %v1157 = vpack.c.b16 %v1005, %v1004
          %v1158 = vpack.c.b16 %v1007, %v1006
          %v1159 = vpack.c.b16 %v1009, %v1008
          %v1160 = vpack.c.b16 %v1011, %v1010
          %v1161 = vpack.c.b16 %v1013, %v1012
          %v1162 = vpack.c.b16 %v1015, %v1014
          %v1163 = vpack.c.b16 %v1017, %v1016
          %v1164 = vpack.c.b16 %v1019, %v1018
          %v1165 = vpack.c.b16 %v1021, %v1020
          %v1166 = vpack.c.b16 %v1023, %v1022
          %v1167 = vpack.c.b16 %v1025, %v1024
          %v1168 = vpack.c.b16 %v1027, %v1026
          %v1169 = vpack.c.b16 %v1029, %v1028
          %v1170 = vpack.c.b16 %v1031, %v1030
          %v1171 = vpack.c.b16 %v1033, %v1032
          %v1172 = vpack.c.b16 %v1035, %v1034
          %v1173 = vpack.c.b16 %v1037, %v1036
          %v1174 = vpack.c.b16 %v1039, %v1038
          %v1175 = vpack.c.b16 %v1041, %v1040
          %v1176 = vpack.c.b16 %v1043, %v1042
          %v1177 = vpack.c.b16 %v1045, %v1044
          %v1178 = vpack.c.b16 %v1047, %v1046
          %v1179 = vpack.c.b16 %v1049, %v1048
          %v1180 = vpack.c.b16 %v1051, %v1050
          %v1181 = vpack.c.b16 %v1053, %v1052
          %1310 = vmatprep.subr.bf16.mxu0 0
          %1311 = vmatpush1.bf16.xpose.msra.mxu0 %v1054
          %1312 = vmatprep.subr.bf16.mxu0 0
          %1313 = vmatpush1.bf16.xpose.msra.mxu0 %v1055
          %1314 = vmatprep.subr.bf16.mxu0 0
          %1315 = vmatpush1.bf16.xpose.msra.mxu0 %v1056
          %1316 = vmatprep.subr.bf16.mxu0 0
          %1317 = vmatpush1.bf16.xpose.msra.mxu0 %v1057
          %1318 = vmatprep.subr.bf16.mxu0 0
          %1319 = vmatpush1.bf16.xpose.msra.mxu0 %v1058
          %1320 = vmatprep.subr.bf16.mxu0 0
          %1321 = vmatpush1.bf16.xpose.msra.mxu0 %v1059
          %1322 = vmatprep.subr.bf16.mxu0 0
          %1323 = vmatpush1.bf16.xpose.msra.mxu0 %v1060
          %1324 = vmatprep.subr.bf16.mxu0 0
          %1325 = vmatpush1.bf16.xpose.msra.mxu0 %v1061
          %1326 = vmatprep.subr.bf16.mxu0 0
          %1327 = vmatpush1.bf16.xpose.msra.mxu0 %v1062
          %1328 = vmatprep.subr.bf16.mxu0 0
          %1329 = vmatpush1.bf16.xpose.msra.mxu0 %v1063
          %1330 = vmatprep.subr.bf16.mxu0 0
          %1331 = vmatpush1.bf16.xpose.msra.mxu0 %v1064
          %1332 = vmatprep.subr.bf16.mxu0 0
          %1333 = vmatpush1.bf16.xpose.msra.mxu0 %v1065
          %1334 = vmatprep.subr.bf16.mxu0 0
          %1335 = vmatpush1.bf16.xpose.msra.mxu0 %v1066
          %1336 = vmatprep.subr.bf16.mxu0 0
          %1337 = vmatpush1.bf16.xpose.msra.mxu0 %v1067
          %1338 = vmatprep.subr.bf16.mxu0 0
          %1339 = vmatpush1.bf16.xpose.msra.mxu0 %v1068
          %1340 = vmatprep.subr.bf16.mxu0 0
          %1341 = vmatpush1.bf16.xpose.msra.mxu0 %v1069
          %1342 = vmatprep.mubr.bf16.mxu0 0
          %1343 = vmatmul.mubr.bf16.gmra.mrb[0].mxu0 %v285
          %v1344 = vpop.f32.mrb[0].mxu0
          %v1345 = vadd.f32 0.0, %v1344
          %v1346 = vpop.f32.mrb[0].mxu0
          %v1347 = vadd.f32 0.0, %v1346
          %v1348 = vpop.f32.mrb[0].mxu0
          %v1349 = vpop.f32.mrb[0].mxu0
          %1350 = vdwg.mxu0
          %1351 = vmatprep.subr.bf16.mxu0 0
          %1352 = vmatpush1.bf16.xpose.msra.mxu0 %v1070
          %1353 = vmatprep.subr.bf16.mxu0 0
          %1354 = vmatpush1.bf16.xpose.msra.mxu0 %v1071
          %1355 = vmatprep.subr.bf16.mxu0 0
          %1356 = vmatpush1.bf16.xpose.msra.mxu0 %v1072
          %1357 = vmatprep.subr.bf16.mxu0 0
          %1358 = vmatpush1.bf16.xpose.msra.mxu0 %v1073
          %1359 = vmatprep.subr.bf16.mxu0 0
          %1360 = vmatpush1.bf16.xpose.msra.mxu0 %v1074
          %1361 = vmatprep.subr.bf16.mxu0 0
          %1362 = vmatpush1.bf16.xpose.msra.mxu0 %v1075
          %1363 = vmatprep.subr.bf16.mxu0 0
          %1364 = vmatpush1.bf16.xpose.msra.mxu0 %v1076
          %1365 = vmatprep.subr.bf16.mxu0 0
          %1366 = vmatpush1.bf16.xpose.msra.mxu0 %v1077
          %1367 = vmatprep.subr.bf16.mxu0 0
          %1368 = vmatpush1.bf16.xpose.msra.mxu0 %v1078
          %1369 = vmatprep.subr.bf16.mxu0 0
          %1370 = vmatpush1.bf16.xpose.msra.mxu0 %v1079
          %1371 = vmatprep.subr.bf16.mxu0 0
          %1372 = vmatpush1.bf16.xpose.msra.mxu0 %v1080
          %1373 = vmatprep.subr.bf16.mxu0 0
          %1374 = vmatpush1.bf16.xpose.msra.mxu0 %v1081
          %1375 = vmatprep.subr.bf16.mxu0 0
          %1376 = vmatpush1.bf16.xpose.msra.mxu0 %v1082
          %1377 = vmatprep.subr.bf16.mxu0 0
          %1378 = vmatpush1.bf16.xpose.msra.mxu0 %v1083
          %1379 = vmatprep.subr.bf16.mxu0 0
          %1380 = vmatpush1.bf16.xpose.msra.mxu0 %v1084
          %1381 = vmatprep.subr.bf16.mxu0 0
          %1382 = vmatpush1.bf16.xpose.msra.mxu0 %v1085
          %1383 = vmatprep.mubr.bf16.mxu0 0
          %1384 = vmatmul.mubr.bf16.gmra.mrb[0].mxu0 %v285
          %v1385 = vpop.f32.mrb[0].mxu0
          %v1386 = vadd.f32 0.0, %v1385
          %v1387 = vpop.f32.mrb[0].mxu0
          %v1388 = vadd.f32 0.0, %v1387
          %v1389 = vpop.f32.mrb[0].mxu0
          %v1390 = vpop.f32.mrb[0].mxu0
          %1391 = vdwg.mxu0
          %1392 = vmatprep.subr.bf16.mxu0 0
          %1393 = vmatpush1.bf16.xpose.msra.mxu0 %v1086
          %1394 = vmatprep.subr.bf16.mxu0 0
          %1395 = vmatpush1.bf16.xpose.msra.mxu0 %v1087
          %1396 = vmatprep.subr.bf16.mxu0 0
          %1397 = vmatpush1.bf16.xpose.msra.mxu0 %v1088
          %1398 = vmatprep.subr.bf16.mxu0 0
          %1399 = vmatpush1.bf16.xpose.msra.mxu0 %v1089
          %1400 = vmatprep.subr.bf16.mxu0 0
          %1401 = vmatpush1.bf16.xpose.msra.mxu0 %v1090
          %1402 = vmatprep.subr.bf16.mxu0 0
          %1403 = vmatpush1.bf16.xpose.msra.mxu0 %v1091
          %1404 = vmatprep.subr.bf16.mxu0 0
          %1405 = vmatpush1.bf16.xpose.msra.mxu0 %v1092
          %1406 = vmatprep.subr.bf16.mxu0 0
          %1407 = vmatpush1.bf16.xpose.msra.mxu0 %v1093
          %1408 = vmatprep.subr.bf16.mxu0 0
          %1409 = vmatpush1.bf16.xpose.msra.mxu0 %v1094
          %1410 = vmatprep.subr.bf16.mxu0 0
          %1411 = vmatpush1.bf16.xpose.msra.mxu0 %v1095
          %1412 = vmatprep.subr.bf16.mxu0 0
          %1413 = vmatpush1.bf16.xpose.msra.mxu0 %v1096
          %1414 = vmatprep.subr.bf16.mxu0 0
          %1415 = vmatpush1.bf16.xpose.msra.mxu0 %v1097
          %1416 = vmatprep.subr.bf16.mxu0 0
          %1417 = vmatpush1.bf16.xpose.msra.mxu0 %v1098
          %1418 = vmatprep.subr.bf16.mxu0 0
          %1419 = vmatpush1.bf16.xpose.msra.mxu0 %v1099
          %1420 = vmatprep.subr.bf16.mxu0 0
          %1421 = vmatpush1.bf16.xpose.msra.mxu0 %v1100
          %1422 = vmatprep.subr.bf16.mxu0 0
          %1423 = vmatpush1.bf16.xpose.msra.mxu0 %v1101
          %1424 = vmatprep.mubr.bf16.mxu0 0
          %1425 = vmatmul.mubr.bf16.gmra.mrb[0].mxu0 %v285
          %v1426 = vpop.f32.mrb[0].mxu0
          %v1427 = vadd.f32 0.0, %v1426
          %v1428 = vpop.f32.mrb[0].mxu0
          %v1429 = vadd.f32 0.0, %v1428
          %v1430 = vpop.f32.mrb[0].mxu0
          %v1431 = vpop.f32.mrb[0].mxu0
          %1432 = vdwg.mxu0
          %1433 = vmatprep.subr.bf16.mxu0 0
          %1434 = vmatpush1.bf16.xpose.msra.mxu0 %v1102
          %1435 = vmatprep.subr.bf16.mxu0 0
          %1436 = vmatpush1.bf16.xpose.msra.mxu0 %v1103
          %1437 = vmatprep.subr.bf16.mxu0 0
          %1438 = vmatpush1.bf16.xpose.msra.mxu0 %v1104
          %1439 = vmatprep.subr.bf16.mxu0 0
          %1440 = vmatpush1.bf16.xpose.msra.mxu0 %v1105
          %1441 = vmatprep.subr.bf16.mxu0 0
          %1442 = vmatpush1.bf16.xpose.msra.mxu0 %v1106
          %1443 = vmatprep.subr.bf16.mxu0 0
          %1444 = vmatpush1.bf16.xpose.msra.mxu0 %v1107
          %1445 = vmatprep.subr.bf16.mxu0 0
          %1446 = vmatpush1.bf16.xpose.msra.mxu0 %v1108
          %1447 = vmatprep.subr.bf16.mxu0 0
          %1448 = vmatpush1.bf16.xpose.msra.mxu0 %v1109
          %1449 = vmatprep.subr.bf16.mxu0 0
          %1450 = vmatpush1.bf16.xpose.msra.mxu0 %v1110
          %1451 = vmatprep.subr.bf16.mxu0 0
          %1452 = vmatpush1.bf16.xpose.msra.mxu0 %v1111
          %1453 = vmatprep.subr.bf16.mxu0 0
          %1454 = vmatpush1.bf16.xpose.msra.mxu0 %v1112
          %1455 = vmatprep.subr.bf16.mxu0 0
          %1456 = vmatpush1.bf16.xpose.msra.mxu0 %v1113
          %1457 = vmatprep.subr.bf16.mxu0 0
          %1458 = vmatpush1.bf16.xpose.msra.mxu0 %v1114
          %1459 = vmatprep.subr.bf16.mxu0 0
          %1460 = vmatpush1.bf16.xpose.msra.mxu0 %v1115
          %1461 = vmatprep.subr.bf16.mxu0 0
          %1462 = vmatpush1.bf16.xpose.msra.mxu0 %v1116
          %1463 = vmatprep.subr.bf16.mxu0 0
          %1464 = vmatpush1.bf16.xpose.msra.mxu0 %v1117
          %1465 = vmatprep.mubr.bf16.mxu0 0
          %1466 = vmatmul.mubr.bf16.gmra.mrb[0].mxu0 %v285
          %v1467 = vpop.f32.mrb[0].mxu0
          %v1468 = vadd.f32 0.0, %v1467
          %v1469 = vpop.f32.mrb[0].mxu0
          %v1470 = vadd.f32 0.0, %v1469
          %v1471 = vpop.f32.mrb[0].mxu0
          %v1472 = vpop.f32.mrb[0].mxu0
          %1473 = vdwg.mxu0
          %1474 = vmatprep.subr.bf16.mxu0 0
          %1475 = vmatpush1.bf16.xpose.msra.mxu0 %v1118
          %1476 = vmatprep.subr.bf16.mxu0 0
          %1477 = vmatpush1.bf16.xpose.msra.mxu0 %v1119
          %1478 = vmatprep.subr.bf16.mxu0 0
          %1479 = vmatpush1.bf16.xpose.msra.mxu0 %v1120
          %1480 = vmatprep.subr.bf16.mxu0 0
          %1481 = vmatpush1.bf16.xpose.msra.mxu0 %v1121
          %1482 = vmatprep.subr.bf16.mxu0 0
          %1483 = vmatpush1.bf16.xpose.msra.mxu0 %v1122
          %1484 = vmatprep.subr.bf16.mxu0 0
          %1485 = vmatpush1.bf16.xpose.msra.mxu0 %v1123
          %1486 = vmatprep.subr.bf16.mxu0 0
          %1487 = vmatpush1.bf16.xpose.msra.mxu0 %v1124
          %1488 = vmatprep.subr.bf16.mxu0 0
          %1489 = vmatpush1.bf16.xpose.msra.mxu0 %v1125
          %1490 = vmatprep.subr.bf16.mxu0 0
          %1491 = vmatpush1.bf16.xpose.msra.mxu0 %v1126
          %1492 = vmatprep.subr.bf16.mxu0 0
          %1493 = vmatpush1.bf16.xpose.msra.mxu0 %v1127
          %1494 = vmatprep.subr.bf16.mxu0 0
          %1495 = vmatpush1.bf16.xpose.msra.mxu0 %v1128
          %1496 = vmatprep.subr.bf16.mxu0 0
          %1497 = vmatpush1.bf16.xpose.msra.mxu0 %v1129
          %1498 = vmatprep.subr.bf16.mxu0 0
          %1499 = vmatpush1.bf16.xpose.msra.mxu0 %v1130
          %1500 = vmatprep.subr.bf16.mxu0 0
          %1501 = vmatpush1.bf16.xpose.msra.mxu0 %v1131
          %1502 = vmatprep.subr.bf16.mxu0 0
          %1503 = vmatpush1.bf16.xpose.msra.mxu0 %v1132
          %1504 = vmatprep.subr.bf16.mxu0 0
          %1505 = vmatpush1.bf16.xpose.msra.mxu0 %v1133
          %1506 = vmatprep.mubr.bf16.mxu0 0
          %1507 = vmatmul.mubr.bf16.gmra.mrb[0].mxu0 %v285
          %v1508 = vpop.f32.mrb[0].mxu0
          %v1509 = vadd.f32 0.0, %v1508
          %v1510 = vpop.f32.mrb[0].mxu0
          %v1511 = vadd.f32 0.0, %v1510
          %v1512 = vpop.f32.mrb[0].mxu0
          %v1513 = vpop.f32.mrb[0].mxu0
          %1514 = vdwg.mxu0
          %1515 = vmatprep.subr.bf16.mxu0 0
          %1516 = vmatpush1.bf16.xpose.msra.mxu0 %v1134
          %1517 = vmatprep.subr.bf16.mxu0 0
          %1518 = vmatpush1.bf16.xpose.msra.mxu0 %v1135
          %1519 = vmatprep.subr.bf16.mxu0 0
          %1520 = vmatpush1.bf16.xpose.msra.mxu0 %v1136
          %1521 = vmatprep.subr.bf16.mxu0 0
          %1522 = vmatpush1.bf16.xpose.msra.mxu0 %v1137
          %1523 = vmatprep.subr.bf16.mxu0 0
          %1524 = vmatpush1.bf16.xpose.msra.mxu0 %v1138
          %1525 = vmatprep.subr.bf16.mxu0 0
          %1526 = vmatpush1.bf16.xpose.msra.mxu0 %v1139
          %1527 = vmatprep.subr.bf16.mxu0 0
          %1528 = vmatpush1.bf16.xpose.msra.mxu0 %v1140
          %1529 = vmatprep.subr.bf16.mxu0 0
          %1530 = vmatpush1.bf16.xpose.msra.mxu0 %v1141
          %1531 = vmatprep.subr.bf16.mxu0 0
          %1532 = vmatpush1.bf16.xpose.msra.mxu0 %v1142
          %1533 = vmatprep.subr.bf16.mxu0 0
          %1534 = vmatpush1.bf16.xpose.msra.mxu0 %v1143
          %1535 = vmatprep.subr.bf16.mxu0 0
          %1536 = vmatpush1.bf16.xpose.msra.mxu0 %v1144
          %1537 = vmatprep.subr.bf16.mxu0 0
          %1538 = vmatpush1.bf16.xpose.msra.mxu0 %v1145
          %1539 = vmatprep.subr.bf16.mxu0 0
          %1540 = vmatpush1.bf16.xpose.msra.mxu0 %v1146
          %1541 = vmatprep.subr.bf16.mxu0 0
          %1542 = vmatpush1.bf16.xpose.msra.mxu0 %v1147
          %1543 = vmatprep.subr.bf16.mxu0 0
          %1544 = vmatpush1.bf16.xpose.msra.mxu0 %v1148
          %1545 = vmatprep.subr.bf16.mxu0 0
          %1546 = vmatpush1.bf16.xpose.msra.mxu0 %v1149
          %1547 = vmatprep.mubr.bf16.mxu0 0
          %1548 = vmatmul.mubr.bf16.gmra.mrb[0].mxu0 %v285
          %v1549 = vpop.f32.mrb[0].mxu0
          %v1550 = vadd.f32 0.0, %v1549
          %v1551 = vpop.f32.mrb[0].mxu0
          %v1552 = vadd.f32 0.0, %v1551
          %v1553 = vpop.f32.mrb[0].mxu0
          %v1554 = vpop.f32.mrb[0].mxu0
          %1555 = vdwg.mxu0
          %1556 = vmatprep.subr.bf16.mxu0 0
          %1557 = vmatpush1.bf16.xpose.msra.mxu0 %v1150
          %1558 = vmatprep.subr.bf16.mxu0 0
          %1559 = vmatpush1.bf16.xpose.msra.mxu0 %v1151
          %1560 = vmatprep.subr.bf16.mxu0 0
          %1561 = vmatpush1.bf16.xpose.msra.mxu0 %v1152
          %1562 = vmatprep.subr.bf16.mxu0 0
          %1563 = vmatpush1.bf16.xpose.msra.mxu0 %v1153
          %1564 = vmatprep.subr.bf16.mxu0 0
          %1565 = vmatpush1.bf16.xpose.msra.mxu0 %v1154
          %1566 = vmatprep.subr.bf16.mxu0 0
          %1567 = vmatpush1.bf16.xpose.msra.mxu0 %v1155
          %1568 = vmatprep.subr.bf16.mxu0 0
          %1569 = vmatpush1.bf16.xpose.msra.mxu0 %v1156
          %1570 = vmatprep.subr.bf16.mxu0 0
          %1571 = vmatpush1.bf16.xpose.msra.mxu0 %v1157
          %1572 = vmatprep.subr.bf16.mxu0 0
          %1573 = vmatpush1.bf16.xpose.msra.mxu0 %v1158
          %1574 = vmatprep.subr.bf16.mxu0 0
          %1575 = vmatpush1.bf16.xpose.msra.mxu0 %v1159
          %1576 = vmatprep.subr.bf16.mxu0 0
          %1577 = vmatpush1.bf16.xpose.msra.mxu0 %v1160
          %1578 = vmatprep.subr.bf16.mxu0 0
          %1579 = vmatpush1.bf16.xpose.msra.mxu0 %v1161
          %1580 = vmatprep.subr.bf16.mxu0 0
          %1581 = vmatpush1.bf16.xpose.msra.mxu0 %v1162
          %1582 = vmatprep.subr.bf16.mxu0 0
          %1583 = vmatpush1.bf16.xpose.msra.mxu0 %v1163
          %1584 = vmatprep.subr.bf16.mxu0 0
          %1585 = vmatpush1.bf16.xpose.msra.mxu0 %v1164
          %1586 = vmatprep.subr.bf16.mxu0 0
          %1587 = vmatpush1.bf16.xpose.msra.mxu0 %v1165
          %1588 = vmatprep.mubr.bf16.mxu0 0
          %1589 = vmatmul.mubr.bf16.gmra.mrb[0].mxu0 %v285
          %v1590 = vpop.f32.mrb[0].mxu0
          %v1591 = vadd.f32 0.0, %v1590
          %v1592 = vpop.f32.mrb[0].mxu0
          %v1593 = vadd.f32 0.0, %v1592
          %v1594 = vpop.f32.mrb[0].mxu0
          %v1595 = vpop.f32.mrb[0].mxu0
          %1596 = vdwg.mxu0
          %1597 = vmatprep.subr.bf16.mxu0 0
          %1598 = vmatpush1.bf16.xpose.msra.mxu0 %v1166
          %1599 = vmatprep.subr.bf16.mxu0 0
          %1600 = vmatpush1.bf16.xpose.msra.mxu0 %v1167
          %1601 = vmatprep.subr.bf16.mxu0 0
          %1602 = vmatpush1.bf16.xpose.msra.mxu0 %v1168
          %1603 = vmatprep.subr.bf16.mxu0 0
          %1604 = vmatpush1.bf16.xpose.msra.mxu0 %v1169
          %1605 = vmatprep.subr.bf16.mxu0 0
          %1606 = vmatpush1.bf16.xpose.msra.mxu0 %v1170
          %1607 = vmatprep.subr.bf16.mxu0 0
          %1608 = vmatpush1.bf16.xpose.msra.mxu0 %v1171
          %1609 = vmatprep.subr.bf16.mxu0 0
          %1610 = vmatpush1.bf16.xpose.msra.mxu0 %v1172
          %1611 = vmatprep.subr.bf16.mxu0 0
          %1612 = vmatpush1.bf16.xpose.msra.mxu0 %v1173
          %1613 = vmatprep.subr.bf16.mxu0 0
          %1614 = vmatpush1.bf16.xpose.msra.mxu0 %v1174
          %1615 = vmatprep.subr.bf16.mxu0 0
          %1616 = vmatpush1.bf16.xpose.msra.mxu0 %v1175
          %1617 = vmatprep.subr.bf16.mxu0 0
          %1618 = vmatpush1.bf16.xpose.msra.mxu0 %v1176
          %1619 = vmatprep.subr.bf16.mxu0 0
          %1620 = vmatpush1.bf16.xpose.msra.mxu0 %v1177
          %1621 = vmatprep.subr.bf16.mxu0 0
          %1622 = vmatpush1.bf16.xpose.msra.mxu0 %v1178
          %1623 = vmatprep.subr.bf16.mxu0 0
          %1624 = vmatpush1.bf16.xpose.msra.mxu0 %v1179
          %1625 = vmatprep.subr.bf16.mxu0 0
          %1626 = vmatpush1.bf16.xpose.msra.mxu0 %v1180
          %1627 = vmatprep.subr.bf16.mxu0 0
          %1628 = vmatpush1.bf16.xpose.msra.mxu0 %v1181
          %1629 = vmatprep.mubr.bf16.mxu0 0
          %1630 = vmatmul.mubr.bf16.gmra.mrb[0].mxu0 %v285
          %v1631 = vpop.f32.mrb[0].mxu0
          %v1632 = vadd.f32 0.0, %v1631
          %v1633 = vpop.f32.mrb[0].mxu0
          %v1634 = vadd.f32 0.0, %v1633
          %v1635 = vpop.f32.mrb[0].mxu0
          %v1636 = vpop.f32.mrb[0].mxu0
          %1637 = vdwg.mxu0
          %1638 = vst [vmem:[%s203] sm:$0xff] %v1345
          %1639 = vst [vmem:[%s203 + $0x8] sm:$0xff] %v1347
          %1640 = vst [vmem:[%s203 + $0x10] sm:$0xff] %v1386
          %1641 = vst [vmem:[%s203 + $0x18] sm:$0xff] %v1388
          %1642 = vst [vmem:[%s203 + $0x20] sm:$0xff] %v1427
          %1643 = vst [vmem:[%s203 + $0x28] sm:$0xff] %v1429
          %1644 = vst [vmem:[%s203 + $0x30] sm:$0xff] %v1468
          %1645 = vst [vmem:[%s203 + $0x38] sm:$0xff] %v1470
          %1646 = vst [vmem:[%s203 + $0x40] sm:$0xff] %v1509
          %1647 = vst [vmem:[%s203 + $0x48] sm:$0xff] %v1511
          %1648 = vst [vmem:[%s203 + $0x50] sm:$0xff] %v1550
          %1649 = vst [vmem:[%s203 + $0x58] sm:$0xff] %v1552
          %1650 = vst [vmem:[%s203 + $0x60] sm:$0xff] %v1591
          %1651 = vst [vmem:[%s203 + $0x68] sm:$0xff] %v1593
          %1652 = vst [vmem:[%s203 + $0x70] sm:$0xff] %v1632
          %1653 = vst [vmem:[%s203 + $0x78] sm:$0xff] %v1634
        $region44: #{memory_moco_forward.1} parent=31 // pred_fallthru
          _
        %s1654 = smul.u32 16, %s17
        %p1655 = scmp.lt.s32.totalorder %s1654, 79
        %s1656 = scalar_select %p1655, %s1654, 79
        %s1657 = smul.addr %s1656, 8
        %s1658 = scalar_lea.vmem %s3, %s1657
        // Predicated region
        $region45: #{memory_moco_forward.1} parent=31 // pred_check
          %p1659 = pneg %p109
        $region46: #{memory_moco_forward.1} parent=31 // pred_check_branch
          %1661 = sbr.rel (%p1659) target = $region48
        $region47: #{memory_moco_forward.1} parent=31 // pred_region
          %s1662 = smul.u32 16, %s17
        $region48: #{memory_moco_forward.1} parent=31 // pred_fallthru
          _
      $region32: #{memory_moco_forward.1} parent=5 // pred_fallthru
        _
      %p1663 = scmp.le.s32.totalorder 2, %s12
      // Predicated region
      $region49: #{memory_moco_forward.1} parent=5 // pred_check
        %p1664 = pneg %p1663
      $region50: #{memory_moco_forward.1} parent=5 // pred_check_branch
        %1666 = sbr.rel (%p1664) target = $region52
      $region51: #{memory_moco_forward.1} parent=5 // pred_region
        %s1667 = ssub.s32 %s12, 2
        // Predicated region
        $region53: #{memory_moco_forward.1} parent=51 // pred_check
          %p1668 = pneg %p115
        $region54: #{memory_moco_forward.1} parent=51 // pred_check_branch
          %1670 = sbr.rel (%p1668) target = $region56
        $region55: #{memory_moco_forward.1} parent=51 // pred_region
          %s1671 = smul.u32 16, %s18
          %p1672 = scmp.lt.s32.totalorder %s1671, 79
          %s1673 = scalar_select %p1672, %s1671, 79
          %s1674 = smul.addr %s1673, 8
          %s1675 = scalar_lea.vmem %s3, %s1674
        $region56: #{memory_moco_forward.1} parent=51 // pred_fallthru
          _
      $region52: #{memory_moco_forward.1} parent=5 // pred_fallthru
        _
    $region6: #{memory_moco_forward.1} parent=1 // loop_footer
      %s16 = sadd.s32 1, %s12
    $region7: #{memory_moco_forward.1} parent=1 // loop_footer_branch
      %11 = sbr.rel target = $region3
    $region8: #{memory_moco_forward.1} parent=1 // loop_exit
      _
    %1676 = vsyncpa [#allocation3], 1
    %s1677 = scalar_lea.sflag [#allocation3], 1
    %1678 = vsyncpa %s1677, 1

</llo_original>
